<compile_context>
chip_gen: v5e
topology: v5e:2x2
jax: 0.10.0
libtpu: 0.0.40
codegen_flags: <defaults>
</compile_context>

<pallas_src>
import functools

import numpy as np
import jax
import jax.numpy as jnp
from jax.experimental import pallas as pl
from jax.experimental.pallas import tpu as pltpu


def _round_up(x, m):
    return ((x + m - 1) // m) * m


# ----------------------------------------------------------------------------
# Deterministic parameter construction (mirrors torchaudio MelSpectrogram init)
# ----------------------------------------------------------------------------
def hann_window(win_length: int) -> np.ndarray:
    # torch.hann_window(win_length, periodic=True)
    n = np.arange(win_length, dtype=np.float64)
    return (0.5 - 0.5 * np.cos(2.0 * np.pi * n / win_length)).astype(np.float32)


def windowed_rdft_matrix(n_fft: int, n_freq: int, window: np.ndarray) -> np.ndarray:
    # Combined [cos | -sin] one-sided DFT matrix with the analysis window folded
    # in (diag(window) @ DFT).  Nyquist bin dropped (its mel filterbank row is
    # exactly zero for f_min=0, f_max=sr/2, norm=None / HTK).
    n = np.arange(n_fft, dtype=np.float64)[:, None]
    k = np.arange(n_freq, dtype=np.float64)[None, :]
    ang = 2.0 * np.pi * n * k / n_fft
    mat = np.concatenate([np.cos(ang), -np.sin(ang)], axis=1)
    return (window.astype(np.float64)[:, None] * mat).astype(np.float32)


def mel_filterbank(n_freq_full: int, n_mels: int, sample_rate: float) -> np.ndarray:
    # torchaudio.functional.melscale_fbanks, HTK scale, norm=None, f_min=0,
    # f_max=sample_rate/2.  Shape (n_freq_full, n_mels).
    f_min, f_max = 0.0, sample_rate / 2.0
    all_freqs = np.linspace(0.0, sample_rate / 2.0, n_freq_full)

    def hz_to_mel(f):
        return 2595.0 * np.log10(1.0 + f / 700.0)

    def mel_to_hz(m):
        return 700.0 * (10.0 ** (m / 2595.0) - 1.0)

    m_pts = np.linspace(hz_to_mel(f_min), hz_to_mel(f_max), n_mels + 2)
    f_pts = mel_to_hz(m_pts)
    f_diff = f_pts[1:] - f_pts[:-1]
    slopes = f_pts[None, :] - all_freqs[:, None]          # (n_freq, n_mels + 2)
    down = -slopes[:, :-2] / f_diff[:-1]
    up = slopes[:, 2:] / f_diff[1:]
    fb = np.maximum(0.0, np.minimum(down, up))
    return fb.astype(np.float32)


def frame_signals_stacked(x, y, n_fft, hop, f_pad, n_frames):
    # torch.stft(center=True, pad_mode="reflect") framing for both signals at
    # once; output is bf16 (cast BEFORE the gather).  Frames beyond n_frames
    # gather from an appended zero region, so they are exactly zero.
    pad = n_fft // 2
    xy = jnp.stack([x, y], axis=1).astype(jnp.float32)             # (B, 2, T)
    xyp = jnp.pad(xy, ((0, 0), (0, 0), (pad, pad)), mode="reflect")
    t_reflect = xyp.shape[-1]
    xyp = jnp.pad(xyp, ((0, 0), (0, 0), (0, n_fft))).astype(jnp.bfloat16)
    f_idx = jnp.arange(f_pad)
    starts = jnp.where(f_idx < n_frames, f_idx * hop, t_reflect)   # zero region
    idx = starts[:, None] + jnp.arange(n_fft)[None, :]             # (f_pad, n_fft)
    return xyp[:, :, idx]                                          # (B, 2, f_pad, n_fft) bf16


# ----------------------------------------------------------------------------
# Pallas kernel: per-(batch, frame-tile) loss partial vectors
# ----------------------------------------------------------------------------
def _stft_loss_kernel(fxy_ref, dft_ref, fb_ref, out_ref, *, n_freq, tile_f):
    # One wide bf16 DFT matmul for both signals: M = 2*tile_f, f32 accumulation.
    frames = jnp.concatenate([fxy_ref[0, 0], fxy_ref[0, 1]], axis=0)  # (2*tile_f, n_fft)
    spec = jnp.dot(frames, dft_ref[...], preferred_element_type=jnp.float32)
    re = spec[:, :n_freq]
    im = spec[:, n_freq:]
    power = re * re + im * im                                         # (2*tile_f, n_freq) f32

    # bf16 mel projection (f32 accumulation); ~1e-2 rel error vs f32, fine for a loss.
    mel = jnp.dot(power.astype(jnp.bfloat16), fb_ref[...],
                  preferred_element_type=jnp.float32)                 # (2*tile_f, n_mels)
    mx = mel[:tile_f, :]
    my = mel[tile_f:, :]

    # sc_loss partial: per-mel sum over frames of squared log(1+mel) difference.
    # (keep log(1+m) form for Mosaic lowering compatibility instead of log1p)
    d_log = jnp.log(1.0 + mx) - jnp.log(1.0 + my)
    sc_v = jnp.sum(d_log * d_log, axis=0, keepdims=True)              # (1, n_mels)

    # Per-mel sum of squares over frames (for the L2-over-frames norm).
    nx_v = jnp.sum(mx * mx, axis=0, keepdims=True)
    ny_v = jnp.sum(my * my, axis=0, keepdims=True)

    out_ref[0, 0] = jnp.concatenate([sc_v, nx_v, ny_v], axis=0)       # (3, n_mels)


def _vmem_limit_bytes(tile_f, fft_size, n_freq, n_mels):
    bf16, f32 = 2, 4
    frames_blk = 2 * tile_f * fft_size * bf16             # stacked (2, tile_f, n_fft)
    need = (
        2 * frames_blk                                     # double-buffered input
        + fft_size * 2 * n_freq * bf16                     # DFT (single-buffered)
        + n_freq * n_mels * bf16                           # mel fb
        + 2 * tile_f * 2 * n_freq * f32                    # spec f32 temp
        + 2 * tile_f * n_freq * f32 * 2                    # re^2 / im^2 temps
        + 2 * tile_f * n_mels * f32 * 2                    # mel / log temps
    )
    need = int(need * 1.5) + (4 << 20)                     # compiler scratch headroom
    try:
        cap = int(getattr(pltpu.get_tpu_info(), "vmem_capacity_bytes", 0)) or (64 << 20)
    except Exception:
        cap = 64 << 20
    return max(32 << 20, min(need, (cap * 3) // 4))


def stft_loss(x, y, *, fft_size, shift_size, win_length, n_mels, sample_rate):
    assert win_length == fft_size, "kernel assumes win_length == fft_size"
    assert fft_size % 256 == 0, "fft_size must be a multiple of 256 (lane alignment)"
    n_freq = fft_size // 2                     # Nyquist bin dropped (zero mel weight)

    window = hann_window(win_length)
    dft_w = jnp.asarray(windowed_rdft_matrix(fft_size, n_freq, window)).astype(jnp.bfloat16)

    fb_full = mel_filterbank(fft_size // 2 + 1, n_mels, sample_rate)
    # Nyquist-bin drop is only valid for f_min=0, f_max=sr/2, norm=None (HTK):
    assert float(np.abs(fb_full[-1]).max()) <= 1e-6 * (float(np.abs(fb_full).max()) + 1e-30), \
        "Nyquist mel-fb row is not ~zero; cannot drop the Nyquist bin"
    fb = jnp.asarray(fb_full[:n_freq]).astype(jnp.bfloat16)

    B, T = x.shape
    hop = shift_size
    n_frames = 1 + T // hop

    # Frame tiling: big MXU M dim (the kernel's M is 2*tile_f since x and y are
    # stacked); F padded with zero frames which contribute exactly 0.
    if n_frames >= 512 and fft_size <= 1024:
        tile_f = 512
    elif n_frames >= 256:
        tile_f = 256
    elif n_frames >= 128:
        tile_f = 128
    else:
        tile_f = _round_up(n_frames, 16)
    f_pad = _round_up(n_frames, tile_f)
    n_ft = f_pad // tile_f

    fxy = frame_signals_stacked(x, y, fft_size, hop, f_pad, n_frames)  # (B,2,f_pad,n_fft) bf16

    kernel = functools.partial(_stft_loss_kernel, n_freq=n_freq, tile_f=tile_f)
    vmem_limit = _vmem_limit_bytes(tile_f, fft_size, n_freq, n_mels)

    def _call(single_buffer_consts):
        const_kwargs = dict(pipeline_mode=pl.Buffered(1)) if single_buffer_consts else {}
        grid_spec = pltpu.PrefetchScalarGridSpec(
            num_scalar_prefetch=0,
            grid=(B, n_ft),
            in_specs=[
                pl.BlockSpec((1, 2, tile_f, fft_size), lambda b, ft: (b, 0, ft, 0)),
                pl.BlockSpec((fft_size, 2 * n_freq), lambda b, ft: (0, 0), **const_kwargs),
                pl.BlockSpec((n_freq, n_mels), lambda b, ft: (0, 0), **const_kwargs),
            ],
            out_specs=pl.BlockSpec((1, 1, 3, n_mels), lambda b, ft: (b, ft, 0, 0)),
        )
        return pl.pallas_call(
            kernel,
            out_shape=jax.ShapeDtypeStruct((B, n_ft, 3, n_mels), jnp.float32),
            grid_spec=grid_spec,
            compiler_params=pltpu.CompilerParams(
                dimension_semantics=("parallel", "parallel"),
                vmem_limit_bytes=vmem_limit),
        )(fxy, dft_w, fb)

    try:
        parts = _call(True)
    except Exception:
        # pipeline_mode=Buffered(1) unsupported in this build: fall back to the
        # default double-buffered constant operands (one extra DFT copy in VMEM).
        parts = _call(False)

    # Tiny final reductions in the wrapper (keeps both grid axes "parallel").
    sc_sum = jnp.sum(parts[:, :, 0, :])
    nx = jnp.sum(parts[:, :, 1, :], axis=1)                 # (B, n_mels)
    ny = jnp.sum(parts[:, :, 2, :], axis=1)

    sc_loss = sc_sum * 2.0 / float(B * n_frames * n_mels)   # mse * 2

    # log(L2 norm over frames) == 0.5 * log(sum of squares).  A silent mel band
    # gives -inf (then NaN), matching the torch reference's log(0) behavior.
    x_norm = 0.5 * jnp.log(nx)
    y_norm = 0.5 * jnp.log(ny)
    d = jnp.abs(x_norm - y_norm)
    energy_loss = jnp.mean(jnp.where(d < 1.0, 0.5 * d * d, d - 0.5))  # smooth_l1, beta=1
    return sc_loss, energy_loss


if __name__ == "__main__":
    # Small deterministic example consistent with the module's (B, T) signals.
    B, T = 2, 1024
    fft_size, shift_size, win_length = 256, 64, 256
    n_mels, sample_rate = 16, 8000

    key = jax.random.PRNGKey(0)
    kx, ky = jax.random.split(key)
    x = jax.random.normal(kx, (B, T), dtype=jnp.float32)
    y = jax.random.normal(ky, (B, T), dtype=jnp.float32)

    sc_loss, energy_loss = stft_loss(
        x, y, fft_size=fft_size, shift_size=shift_size,
        win_length=win_length, n_mels=n_mels, sample_rate=sample_rate)
    jax.block_until_ready((sc_loss, energy_loss))
    print("KERNEL_OK")
</pallas_src>

<mosaic_0001>
module attributes {stable_mosaic.version = 11 : i64} {
  func.func @_stft_loss_kernel(%arg0: i32, %arg1: i32, %arg2: memref<1x2x32x256xbf16, #tpu.memory_space<vmem>>, %arg3: memref<256x256xbf16, #tpu.memory_space<vmem>>, %arg4: memref<128x16xbf16, #tpu.memory_space<vmem>>, %arg5: memref<1x1x3x16xf32, #tpu.memory_space<vmem>>) attributes {dimension_semantics = [#tpu.dimension_semantics<parallel>, #tpu.dimension_semantics<parallel>], iteration_bounds = array<i64: 2, 1>, scalar_prefetch = 0 : i64, scratch_operands = 0 : i64, tpu.core_type = #tpu.core_type<tc>, window_params = [{transform_indices = @transform_0, window_bounds = array<i64: 1, 2, 32, 256>}, {pipeline_mode = #tpu.pipeline_mode<synchronous>, transform_indices = @transform_1, window_bounds = array<i64: 256, 256>}, {pipeline_mode = #tpu.pipeline_mode<synchronous>, transform_indices = @transform_2, window_bounds = array<i64: 128, 16>}, {transform_indices = @transform_3, window_bounds = array<i64: 1, 1, 3, 16>}]} {
    %c0 = arith.constant 0 : index
    %c0_0 = arith.constant 0 : index
    %c0_1 = arith.constant 0 : index
    %c0_2 = arith.constant 0 : index
    %0 = vector.load %arg2[%c0, %c0_0, %c0_1, %c0_2] : memref<1x2x32x256xbf16, #tpu.memory_space<vmem>>, vector<1x1x32x256xbf16>
    %1 = vector.shape_cast %0 : vector<1x1x32x256xbf16> to vector<32x256xbf16>
    %c0_3 = arith.constant 0 : index
    %c1 = arith.constant 1 : index
    %c0_4 = arith.constant 0 : index
    %c0_5 = arith.constant 0 : index
    %2 = vector.load %arg2[%c0_3, %c1, %c0_4, %c0_5] : memref<1x2x32x256xbf16, #tpu.memory_space<vmem>>, vector<1x1x32x256xbf16>
    %3 = vector.shape_cast %2 : vector<1x1x32x256xbf16> to vector<32x256xbf16>
    %4 = tpu.concatenate %1, %3 in 0 : vector<32x256xbf16>, vector<32x256xbf16> -> vector<64x256xbf16>
    %c0_6 = arith.constant 0 : index
    %c0_7 = arith.constant 0 : index
    %5 = vector.load %arg3[%c0_6, %c0_7] : memref<256x256xbf16, #tpu.memory_space<vmem>>, vector<256x256xbf16>
    %cst = arith.constant dense<0.000000e+00> : vector<64x256xf32>
    %6 = tpu.matmul %4, %5, %cst {dimension_numbers = #tpu.dot_dimension_numbers<[1], [0], [0], [1], [0, 0, 1, 1], [], []>} : vector<64x256xbf16>, vector<256x256xbf16>, vector<64x256xf32> -> vector<64x256xf32>
    %7 = vector.extract_strided_slice %6 {offsets = [0, 0], sizes = [64, 128], strides = [1, 1]} : vector<64x256xf32> to vector<64x128xf32>
    %8 = vector.extract_strided_slice %6 {offsets = [0, 128], sizes = [64, 128], strides = [1, 1]} : vector<64x256xf32> to vector<64x128xf32>
    %9 = arith.mulf %7, %7 : vector<64x128xf32>
    %10 = arith.mulf %8, %8 : vector<64x128xf32>
    %11 = arith.addf %9, %10 : vector<64x128xf32>
    %12 = arith.truncf %11 : vector<64x128xf32> to vector<64x128xbf16>
    %c0_8 = arith.constant 0 : index
    %c0_9 = arith.constant 0 : index
    %13 = vector.load %arg4[%c0_8, %c0_9] : memref<128x16xbf16, #tpu.memory_space<vmem>>, vector<128x16xbf16>
    %cst_10 = arith.constant dense<0.000000e+00> : vector<64x16xf32>
    %14 = tpu.matmul %12, %13, %cst_10 {dimension_numbers = #tpu.dot_dimension_numbers<[1], [0], [0], [1], [0, 0, 1, 1], [], []>} : vector<64x128xbf16>, vector<128x16xbf16>, vector<64x16xf32> -> vector<64x16xf32>
    %15 = vector.extract_strided_slice %14 {offsets = [0, 0], sizes = [32, 16], strides = [1, 1]} : vector<64x16xf32> to vector<32x16xf32>
    %16 = vector.extract_strided_slice %14 {offsets = [32, 0], sizes = [32, 16], strides = [1, 1]} : vector<64x16xf32> to vector<32x16xf32>
    %cst_11 = arith.constant 1.000000e+00 : f32
    %17 = vector.broadcast %cst_11 : f32 to vector<32x16xf32>
    %18 = arith.addf %17, %15 : vector<32x16xf32>
    %19 = math.log %18 : vector<32x16xf32>
    %cst_12 = arith.constant 1.000000e+00 : f32
    %20 = vector.broadcast %cst_12 : f32 to vector<32x16xf32>
    %21 = arith.addf %20, %16 : vector<32x16xf32>
    %22 = math.log %21 : vector<32x16xf32>
    %23 = arith.subf %19, %22 : vector<32x16xf32>
    %24 = arith.mulf %23, %23 : vector<32x16xf32>
    %cst_13 = arith.constant dense<0.000000e+00> : vector<16xf32>
    %25 = vector.multi_reduction <add>, %24, %cst_13 [0] : vector<32x16xf32> to vector<16xf32>
    %26 = vector.shape_cast %25 : vector<16xf32> to vector<1x16xf32>
    %27 = arith.mulf %15, %15 : vector<32x16xf32>
    %cst_14 = arith.constant dense<0.000000e+00> : vector<16xf32>
    %28 = vector.multi_reduction <add>, %27, %cst_14 [0] : vector<32x16xf32> to vector<16xf32>
    %29 = vector.shape_cast %28 : vector<16xf32> to vector<1x16xf32>
    %30 = arith.mulf %16, %16 : vector<32x16xf32>
    %cst_15 = arith.constant dense<0.000000e+00> : vector<16xf32>
    %31 = vector.multi_reduction <add>, %30, %cst_15 [0] : vector<32x16xf32> to vector<16xf32>
    %32 = vector.shape_cast %31 : vector<16xf32> to vector<1x16xf32>
    %33 = tpu.concatenate %26, %29, %32 in 0 : vector<1x16xf32>, vector<1x16xf32>, vector<1x16xf32> -> vector<3x16xf32>
    %c0_16 = arith.constant 0 : index
    %c0_17 = arith.constant 0 : index
    %c0_18 = arith.constant 0 : index
    %c0_19 = arith.constant 0 : index
    %34 = vector.load %arg5[%c0_16, %c0_17, %c0_18, %c0_19] : memref<1x1x3x16xf32, #tpu.memory_space<vmem>>, vector<1x1x3x16xf32>
    %35 = vector.shape_cast %34 : vector<1x1x3x16xf32> to vector<3x16xf32>
    %36 = vector.shape_cast %33 : vector<3x16xf32> to vector<1x1x3x16xf32>
    tpu.vector_store %arg5[%c0_16, %c0_17, %c0_18, %c0_19], %36 {strides = array<i32>} : memref<1x1x3x16xf32, #tpu.memory_space<vmem>>, vector<1x1x3x16xf32>,
    return
  }
  func.func @transform_0(%arg0: i32, %arg1: i32) -> (i32, i32, i32, i32) {
    %c0_i32 = arith.constant 0 : i32
    %c0_i32_0 = arith.constant 0 : i32
    %c0_i32_1 = arith.constant 0 : i32
    return %arg0, %c0_i32, %arg1, %c0_i32_0 : i32, i32, i32, i32
  }
  func.func @transform_1(%arg0: i32, %arg1: i32) -> (i32, i32) {
    %c0_i32 = arith.constant 0 : i32
    %c0_i32_0 = arith.constant 0 : i32
    %c0_i32_1 = arith.constant 0 : i32
    return %c0_i32, %c0_i32_0 : i32, i32
  }
  func.func @transform_2(%arg0: i32, %arg1: i32) -> (i32, i32) {
    %c0_i32 = arith.constant 0 : i32
    %c0_i32_0 = arith.constant 0 : i32
    %c0_i32_1 = arith.constant 0 : i32
    return %c0_i32, %c0_i32_0 : i32, i32
  }
  func.func @transform_3(%arg0: i32, %arg1: i32) -> (i32, i32, i32, i32) {
    %c0_i32 = arith.constant 0 : i32
    %c0_i32_0 = arith.constant 0 : i32
    %c0_i32_1 = arith.constant 0 : i32
    return %arg0, %arg1, %c0_i32, %c0_i32_0 : i32, i32, i32, i32
  }
}

module attributes {stable_mosaic.version = 11 : i64} {
  func.func @_stft_loss_kernel(%arg0: i32, %arg1: i32, %arg2: memref<1x2x32x256xbf16, #tpu.memory_space<vmem>>, %arg3: memref<256x256xbf16, #tpu.memory_space<vmem>>, %arg4: memref<128x16xbf16, #tpu.memory_space<vmem>>, %arg5: memref<1x1x3x16xf32, #tpu.memory_space<vmem>>) attributes {dimension_semantics = [#tpu.dimension_semantics<parallel>, #tpu.dimension_semantics<parallel>], iteration_bounds = array<i64: 2, 1>, scalar_prefetch = 0 : i64, scratch_operands = 0 : i64, tpu.core_type = #tpu.core_type<tc>, window_params = [{transform_indices = @transform_0, window_bounds = array<i64: 1, 2, 32, 256>}, {pipeline_mode = #tpu.pipeline_mode<synchronous>, transform_indices = @transform_1, window_bounds = array<i64: 256, 256>}, {pipeline_mode = #tpu.pipeline_mode<synchronous>, transform_indices = @transform_2, window_bounds = array<i64: 128, 16>}, {transform_indices = @transform_3, window_bounds = array<i64: 1, 1, 3, 16>}]} {
    %c0 = arith.constant 0 : index
    %c0_0 = arith.constant 0 : index
    %c0_1 = arith.constant 0 : index
    %c0_2 = arith.constant 0 : index
    %0 = vector.load %arg2[%c0, %c0_0, %c0_1, %c0_2] : memref<1x2x32x256xbf16, #tpu.memory_space<vmem>>, vector<1x1x32x256xbf16>
    %1 = vector.shape_cast %0 : vector<1x1x32x256xbf16> to vector<32x256xbf16>
    %c0_3 = arith.constant 0 : index
    %c1 = arith.constant 1 : index
    %c0_4 = arith.constant 0 : index
    %c0_5 = arith.constant 0 : index
    %2 = vector.load %arg2[%c0_3, %c1, %c0_4, %c0_5] : memref<1x2x32x256xbf16, #tpu.memory_space<vmem>>, vector<1x1x32x256xbf16>
    %3 = vector.shape_cast %2 : vector<1x1x32x256xbf16> to vector<32x256xbf16>
    %4 = tpu.concatenate %1, %3 in 0 : vector<32x256xbf16>, vector<32x256xbf16> -> vector<64x256xbf16>
    %c0_6 = arith.constant 0 : index
    %c0_7 = arith.constant 0 : index
    %5 = vector.load %arg3[%c0_6, %c0_7] : memref<256x256xbf16, #tpu.memory_space<vmem>>, vector<256x256xbf16>
    %cst = arith.constant dense<0.000000e+00> : vector<64x256xf32>
    %6 = tpu.matmul %4, %5, %cst {dimension_numbers = #tpu.dot_dimension_numbers<[1], [0], [0], [1], [0, 0, 1, 1], [], []>} : vector<64x256xbf16>, vector<256x256xbf16>, vector<64x256xf32> -> vector<64x256xf32>
    %7 = vector.extract_strided_slice %6 {offsets = [0, 0], sizes = [64, 128], strides = [1, 1]} : vector<64x256xf32> to vector<64x128xf32>
    %8 = vector.extract_strided_slice %6 {offsets = [0, 128], sizes = [64, 128], strides = [1, 1]} : vector<64x256xf32> to vector<64x128xf32>
    %9 = arith.mulf %7, %7 : vector<64x128xf32>
    %10 = arith.mulf %8, %8 : vector<64x128xf32>
    %11 = arith.addf %9, %10 : vector<64x128xf32>
    %12 = arith.truncf %11 : vector<64x128xf32> to vector<64x128xbf16>
    %c0_8 = arith.constant 0 : index
    %c0_9 = arith.constant 0 : index
    %13 = vector.load %arg4[%c0_8, %c0_9] : memref<128x16xbf16, #tpu.memory_space<vmem>>, vector<128x16xbf16>
    %cst_10 = arith.constant dense<0.000000e+00> : vector<64x16xf32>
    %14 = tpu.matmul %12, %13, %cst_10 {dimension_numbers = #tpu.dot_dimension_numbers<[1], [0], [0], [1], [0, 0, 1, 1], [], []>} : vector<64x128xbf16>, vector<128x16xbf16>, vector<64x16xf32> -> vector<64x16xf32>
    %15 = vector.extract_strided_slice %14 {offsets = [0, 0], sizes = [32, 16], strides = [1, 1]} : vector<64x16xf32> to vector<32x16xf32>
    %16 = vector.extract_strided_slice %14 {offsets = [32, 0], sizes = [32, 16], strides = [1, 1]} : vector<64x16xf32> to vector<32x16xf32>
    %cst_11 = arith.constant 1.000000e+00 : f32
    %17 = vector.broadcast %cst_11 : f32 to vector<32x16xf32>
    %18 = arith.addf %17, %15 : vector<32x16xf32>
    %19 = math.log %18 : vector<32x16xf32>
    %cst_12 = arith.constant 1.000000e+00 : f32
    %20 = vector.broadcast %cst_12 : f32 to vector<32x16xf32>
    %21 = arith.addf %20, %16 : vector<32x16xf32>
    %22 = math.log %21 : vector<32x16xf32>
    %23 = arith.subf %19, %22 : vector<32x16xf32>
    %24 = arith.mulf %23, %23 : vector<32x16xf32>
    %cst_13 = arith.constant dense<0.000000e+00> : vector<16xf32>
    %25 = vector.multi_reduction <add>, %24, %cst_13 [0] : vector<32x16xf32> to vector<16xf32>
    %26 = vector.shape_cast %25 : vector<16xf32> to vector<1x16xf32>
    %27 = arith.mulf %15, %15 : vector<32x16xf32>
    %cst_14 = arith.constant dense<0.000000e+00> : vector<16xf32>
    %28 = vector.multi_reduction <add>, %27, %cst_14 [0] : vector<32x16xf32> to vector<16xf32>
    %29 = vector.shape_cast %28 : vector<16xf32> to vector<1x16xf32>
    %30 = arith.mulf %16, %16 : vector<32x16xf32>
    %cst_15 = arith.constant dense<0.000000e+00> : vector<16xf32>
    %31 = vector.multi_reduction <add>, %30, %cst_15 [0] : vector<32x16xf32> to vector<16xf32>
    %32 = vector.shape_cast %31 : vector<16xf32> to vector<1x16xf32>
    %33 = tpu.concatenate %26, %29, %32 in 0 : vector<1x16xf32>, vector<1x16xf32>, vector<1x16xf32> -> vector<3x16xf32>
    %c0_16 = arith.constant 0 : index
    %c0_17 = arith.constant 0 : index
    %c0_18 = arith.constant 0 : index
    %c0_19 = arith.constant 0 : index
    %34 = vector.load %arg5[%c0_16, %c0_17, %c0_18, %c0_19] : memref<1x1x3x16xf32, #tpu.memory_space<vmem>>, vector<1x1x3x16xf32>
    %35 = vector.shape_cast %34 : vector<1x1x3x16xf32> to vector<3x16xf32>
    %36 = vector.shape_cast %33 : vector<3x16xf32> to vector<1x1x3x16xf32>
    tpu.vector_store %arg5[%c0_16, %c0_17, %c0_18, %c0_19], %36 {strides = array<i32>} : memref<1x1x3x16xf32, #tpu.memory_space<vmem>>, vector<1x1x3x16xf32>,
    return
  }
  func.func @transform_0(%arg0: i32, %arg1: i32) -> (i32, i32, i32, i32) {
    %c0_i32 = arith.constant 0 : i32
    %c0_i32_0 = arith.constant 0 : i32
    %c0_i32_1 = arith.constant 0 : i32
    return %arg0, %c0_i32, %arg1, %c0_i32_0 : i32, i32, i32, i32
  }
  func.func @transform_1(%arg0: i32, %arg1: i32) -> (i32, i32) {
    %c0_i32 = arith.constant 0 : i32
    %c0_i32_0 = arith.constant 0 : i32
    %c0_i32_1 = arith.constant 0 : i32
    return %c0_i32, %c0_i32_0 : i32, i32
  }
  func.func @transform_2(%arg0: i32, %arg1: i32) -> (i32, i32) {
    %c0_i32 = arith.constant 0 : i32
    %c0_i32_0 = arith.constant 0 : i32
    %c0_i32_1 = arith.constant 0 : i32
    return %c0_i32, %c0_i32_0 : i32, i32
  }
  func.func @transform_3(%arg0: i32, %arg1: i32) -> (i32, i32, i32, i32) {
    %c0_i32 = arith.constant 0 : i32
    %c0_i32_0 = arith.constant 0 : i32
    %c0_i32_1 = arith.constant 0 : i32
    return %arg0, %arg1, %c0_i32, %c0_i32_0 : i32, i32, i32, i32
  }
}

</mosaic_0001>

<llo_original>
// kernel: tpu_custom_call.1
$region0: #{tpu_custom_call.1}
  #allocation0 [shape = 'u32[]', space=smem, size = 0x4, offset = 0x4, fixed_abs, tag = 'smem constant byte address 0x4 - core index']
  #allocation1 [shape = 'u32[72,128]{1,0:T(1,128)}', space=vmem, size = 0x9000, scoped, tag = 'internal scratch']
  %s0 = inlined_call_operand.hbm [shape: bf16[2,2,32,256], index: 0, kind: input, shape index: {}]
  %s1 = inlined_call_operand.hbm [shape: bf16[256,256], index: 1, kind: input, shape index: {}]
  %s2 = inlined_call_operand.vmem [shape: bf16[128,16], index: 2, kind: input, shape index: {}]
  %s3 = inlined_call_operand.vmem [shape: f32[2,1,3,16], index: 3, kind: output, shape index: {}]
  %s4 = sld [smem:[#allocation0]]
  $region53: #{tpu_custom_call.1} parent=0
    _
  %s6 = ssub.s32 1, %s4
  %s7 = scalar_select 0, %s6, %s4
  $region1: #{tpu_custom_call.1} parent=0
    #allocation2 [shape = 'u8[65536]{0}', space=vmem, size = 0x10000, scoped, tag = 'input window, operand 0']
    #allocation3 [shape = 's32[2]{0}', space=sflag, size = 0x8, scoped, tag = 'scoped memory for tpu_custom_call.1']
    #allocation4 [shape = 'u8[131072]{0}', space=vmem, size = 0x20000, scoped, tag = 'input window, operand 1, single buffered']
    #allocation5 [shape = 's32[1]{0}', space=sflag, size = 0x4, scoped, tag = 'scoped memory for tpu_custom_call.1']
    %8 = vsyncpa [#allocation3], 0
    %s9 = scalar_lea.sflag [#allocation3], 1
    %10 = vsyncpa %s9, 0
    %11 = vsyncpa [#allocation5], 0
    loop: start=0, step=1, limit=4
    $region2: #{tpu_custom_call.1} parent=1 // loop_pre_header
      _
    $region3: #{tpu_custom_call.1} parent=1 // loop_header
      %s13 = sphi 0, %s17
      %p14 = scmp.ge.s32.totalorder %s13, 4
      %s20 = sphi 0, %s32
      %s21 = sphi 0, %s28
      %s22 = sphi 0, %s20
      %s23 = sphi 0, %s21
      %s24 = sphi 0, %s22
      %s25 = sphi 0, %s23
      %s37 = sphi 0, %s39
      %s40 = sphi 0, %s37
      %s41 = sphi 0, %s40
      %s57 = sphi 0, %s41
      %s61 = sphi 0, %s61
      %s63 = sphi 0, %s61
      %s64 = sphi 0, %s63
      %s78 = sphi 0, %s64
      %s82 = sphi 0, %s82
      %s84 = sphi 0, %s82
      %s85 = sphi 0, %s84
      %s99 = sphi 0, %s85
      %s107 = sphi 0, %s109
      %s110 = sphi 0, %s107
      %s111 = sphi 0, %s110
      %s127 = sphi 0, %s111
    $region4: #{tpu_custom_call.1} parent=1 // loop_header_branch
      %16 = sbr.rel (%p14) target = $region8
    $region5: #{tpu_custom_call.1} parent=1 // loop_body
      %s18 = ssub.s32 %s13, 1
      %s19 = ssub.s32 %s13, 2
      %s26 = sadd.s32 1, %s21
      %p27 = scmp.ge.s32.totalorder %s26, 1
      %s28 = scalar_select %p27, 0, %s26
      %s29 = sadd.s32 1, %s20
      %s30 = scalar_select %p27, %s29, %s20
      %p31 = scmp.ge.s32.totalorder %s30, 2
      %s32 = scalar_select %p31, 0, %s30
      %s33 = ssub.s32 %s20, %s32
      %s34 = ssub.s32 %s21, %s28
      %s35 = sor.u32 %s33, %s34
      %p36 = scmp.eq.s32.totalorder %s35, 0
      %s38 = sadd.s32 %s37, 1
      %s39 = scalar_select %p36, %s37, %s38
      %p42 = pneg %p36
      %p43 = scmp.eq.s32.totalorder %s13, 1
      %p44 = por %p42, %p43
      %p45 = scmp.ne.s32.totalorder %s37, %s40
      %p46 = scmp.eq.s32.totalorder %s13, 0
      %p47 = por %p45, %p46
      %p48 = scmp.ne.s32.totalorder %s37, %s40
      %p49 = scmp.eq.s32.totalorder %s18, 1
      %p50 = por %p48, %p49
      %p51 = scmp.ne.s32.totalorder %s40, %s41
      %p52 = scmp.eq.s32.totalorder %s18, 0
      %p53 = por %p51, %p52
      %p54 = scmp.ne.s32.totalorder %s40, %s41
      %p55 = scmp.eq.s32.totalorder %s19, 1
      %p56 = por %p54, %p55
      %p58 = scmp.ne.s32.totalorder %s41, %s57
      %p59 = scmp.eq.s32.totalorder %s19, 0
      %p60 = por %p58, %p59
      %s62 = sadd.s32 %s61, 1
      %p65 = scmp.eq.s32.totalorder %s13, 1
      %p66 = scmp.ne.s32.totalorder %s61, %s63
      %p67 = scmp.eq.s32.totalorder %s13, 0
      %p68 = por %p66, %p67
      %p69 = scmp.ne.s32.totalorder %s61, %s63
      %p70 = scmp.eq.s32.totalorder %s18, 1
      %p71 = por %p69, %p70
      %p72 = scmp.ne.s32.totalorder %s63, %s64
      %p73 = scmp.eq.s32.totalorder %s18, 0
      %p74 = por %p72, %p73
      %p75 = scmp.ne.s32.totalorder %s63, %s64
      %p76 = scmp.eq.s32.totalorder %s19, 1
      %p77 = por %p75, %p76
      %p79 = scmp.ne.s32.totalorder %s64, %s78
      %p80 = scmp.eq.s32.totalorder %s19, 0
      %p81 = por %p79, %p80
      %s83 = sadd.s32 %s82, 1
      %p86 = scmp.eq.s32.totalorder %s13, 1
      %p87 = scmp.ne.s32.totalorder %s82, %s84
      %p88 = scmp.eq.s32.totalorder %s13, 0
      %p89 = por %p87, %p88
      %p90 = scmp.ne.s32.totalorder %s82, %s84
      %p91 = scmp.eq.s32.totalorder %s18, 1
      %p92 = por %p90, %p91
      %p93 = scmp.ne.s32.totalorder %s84, %s85
      %p94 = scmp.eq.s32.totalorder %s18, 0
      %p95 = por %p93, %p94
      %p96 = scmp.ne.s32.totalorder %s84, %s85
      %p97 = scmp.eq.s32.totalorder %s19, 1
      %p98 = por %p96, %p97
      %p100 = scmp.ne.s32.totalorder %s85, %s99
      %p101 = scmp.eq.s32.totalorder %s19, 0
      %p102 = por %p100, %p101
      %s103 = ssub.s32 %s20, %s32
      %s104 = ssub.s32 %s21, %s28
      %s105 = sor.u32 %s103, %s104
      %p106 = scmp.eq.s32.totalorder %s105, 0
      %s108 = sadd.s32 %s107, 1
      %s109 = scalar_select %p106, %s107, %s108
      %p112 = pneg %p106
      %p113 = scmp.eq.s32.totalorder %s13, 1
      %p114 = por %p112, %p113
      %p115 = scmp.ne.s32.totalorder %s107, %s110
      %p116 = scmp.eq.s32.totalorder %s13, 0
      %p117 = por %p115, %p116
      %p118 = scmp.ne.s32.totalorder %s107, %s110
      %p119 = scmp.eq.s32.totalorder %s18, 1
      %p120 = por %p118, %p119
      %p121 = scmp.ne.s32.totalorder %s110, %s111
      %p122 = scmp.eq.s32.totalorder %s18, 0
      %p123 = por %p121, %p122
      %p124 = scmp.ne.s32.totalorder %s110, %s111
      %p125 = scmp.eq.s32.totalorder %s19, 1
      %p126 = por %p124, %p125
      %p128 = scmp.ne.s32.totalorder %s111, %s127
      %p129 = scmp.eq.s32.totalorder %s19, 0
      %p130 = por %p128, %p129
      %p131 = scmp.le.s32.totalorder 1, %s13
      %p132 = scmp.lt.s32.totalorder %s13, 3
      %p133 = pnand %p131, %p132
      %p134 = pneg %p133
      // Predicated region
      $region9: #{tpu_custom_call.1} parent=5 // pred_check
        _
      $region10: #{tpu_custom_call.1} parent=5 // pred_check_branch
        %136 = sbr.rel (%p133) target = $region12
      $region11: #{tpu_custom_call.1} parent=5 // pred_region
        %s137 = ssub.s32 %s13, 1
        // Predicated region
        $region13: #{tpu_custom_call.1} parent=11 // pred_check
          %p138 = pneg %p74
        $region14: #{tpu_custom_call.1} parent=11 // pred_check_branch
          %140 = sbr.rel (%p138) target = $region16
        $region15: #{tpu_custom_call.1} parent=11 // pred_region
          %142 = vsyncadd [#allocation5], 0
          %s143 = sshll.u32 %s1, 4
          %s144 = int_to_ptr.hbm [resolvable:$true] %s143
          %s145 = sshll.u32 [#allocation4], 4
          %s146 = int_to_ptr.vmem [resolvable:$true] %s145
          %151 = dma.hbm_to_vmem [thread:$0]  %s144, 4096, %s146, [#allocation5], 128, 128, 8
        $region16: #{tpu_custom_call.1} parent=11 // pred_fallthru
          _
        // Predicated region
        $region17: #{tpu_custom_call.1} parent=11 // pred_check
          %p152 = pneg %p95
        $region18: #{tpu_custom_call.1} parent=11 // pred_check_branch
          %154 = sbr.rel (%p152) target = $region20
        $region19: #{tpu_custom_call.1} parent=11 // pred_region
          _
        $region20: #{tpu_custom_call.1} parent=11 // pred_fallthru
          _
      $region12: #{tpu_custom_call.1} parent=5 // pred_fallthru
        _
      %p155 = scmp.lt.s32.totalorder %s13, 2
      // Predicated region
      $region21: #{tpu_custom_call.1} parent=5 // pred_check
        %p156 = pneg %p155
      $region22: #{tpu_custom_call.1} parent=5 // pred_check_branch
        %158 = sbr.rel (%p156) target = $region24
      $region23: #{tpu_custom_call.1} parent=5 // pred_region
        // Predicated region
        $region25: #{tpu_custom_call.1} parent=23 // pred_check
          %p159 = pneg %p47
        $region26: #{tpu_custom_call.1} parent=23 // pred_check_branch
          %161 = sbr.rel (%p159) target = $region28
        $region27: #{tpu_custom_call.1} parent=23 // pred_region
          %s162 = sand.u32 %s37, 1
          %s163 = scalar_lea.sflag [#allocation3], %s162
          %s164 = sand.u32 %s37, 1
          %s165 = smul.addr %s164, 64
          %s166 = scalar_lea.vmem [#allocation2], %s165
          %s167 = smul.u32 4, %s21
          %169 = vsyncadd %s163, 0
          %s170 = smul.addr %s167, 2
          %s171 = smul.addr %s20, 16
          %s172 = sadd.s32 %s170, %s171
          %s173 = smul.addr %s172, 4
          %s174 = scalar_lea.hbm %s0, %s173
          %s175 = sshll.u32 %s174, 4
          %s176 = int_to_ptr.hbm [resolvable:$true] %s175
          %s177 = sshll.u32 %s166, 4
          %s178 = int_to_ptr.vmem [resolvable:$true] %s177
          %183 = dma.hbm_to_vmem [thread:$0]  %s176, 1024, %s178, %s163, 128, 128, 8
        $region28: #{tpu_custom_call.1} parent=23 // pred_fallthru
          _
      $region24: #{tpu_custom_call.1} parent=5 // pred_fallthru
        _
      %p184 = scmp.le.s32.totalorder 1, %s13
      %p185 = scmp.lt.s32.totalorder %s13, 3
      %p186 = pnand %p184, %p185
      %p187 = pneg %p186
      // Predicated region
      $region29: #{tpu_custom_call.1} parent=5 // pred_check
        _
      $region30: #{tpu_custom_call.1} parent=5 // pred_check_branch
        %189 = sbr.rel (%p186) target = $region32
      $region31: #{tpu_custom_call.1} parent=5 // pred_region
        %s190 = ssub.s32 %s13, 1
        %s191 = sand.u32 %s40, 1
        %s192 = scalar_lea.sflag [#allocation3], %s191
        %s193 = sand.u32 %s40, 1
        %s194 = smul.addr %s193, 64
        %s195 = scalar_lea.vmem [#allocation2], %s194
        // Predicated region
        $region33: #{tpu_custom_call.1} parent=31 // pred_check
          %p196 = pneg %p53
        $region34: #{tpu_custom_call.1} parent=31 // pred_check_branch
          %198 = sbr.rel (%p196) target = $region36
        $region35: #{tpu_custom_call.1} parent=31 // pred_region
          %200 = dma.done %s192, 1024
        $region36: #{tpu_custom_call.1} parent=31 // pred_fallthru
          _
        // Predicated region
        $region37: #{tpu_custom_call.1} parent=31 // pred_check
          %p201 = pneg %p74
        $region38: #{tpu_custom_call.1} parent=31 // pred_check_branch
          %203 = sbr.rel (%p201) target = $region40
        $region39: #{tpu_custom_call.1} parent=31 // pred_region
          %205 = dma.done [#allocation5], 4096
        $region40: #{tpu_custom_call.1} parent=31 // pred_fallthru
          _
        %s206 = sand.u32 %s40, 1
        %s207 = scalar_lea.sflag [#allocation3], %s206
        %s208 = sand.u32 %s40, 1
        %s209 = smul.addr %s208, 64
        %s210 = scalar_lea.vmem [#allocation2], %s209
        %p211 = pneg %p53
        %p212 = pneg %p50
        %p213 = pneg %p74
        %p214 = pneg %p71
        %p215 = pneg %p95
        %p216 = pneg %p92
        %p217 = pneg %p123
        %p218 = pneg %p120
        %p219 = scmp.lt.s32.totalorder %s22, 1
        %s220 = scalar_select %p219, %s22, 1
        %p221 = scmp.lt.s32.totalorder %s23, 0
        %s222 = scalar_select %p221, %s23, 0
        %s223 = sadd.s32 %s222, %s220
        %s224 = smul.addr %s223, 4
        %s225 = scalar_lea.vmem %s3, %s224
        %s226 = smul.u32 4, %s23
        %p227 = scmp.lt.s32.totalorder %s22, 1
        %s228 = scalar_select %p227, %s22, 1
        %p229 = scmp.lt.s32.totalorder %s23, 0
        %s230 = scalar_select %p229, %s23, 0
        %s231 = sadd.s32 %s230, %s228
        %s232 = smul.addr %s231, 4
        %s233 = scalar_lea.vmem %s3, %s232
        %v234 = vld [vmem:[%s195] sm:$0xff]
        %v235 = vld [vmem:[%s195 + $0x8] sm:$0xff]
        %v236 = vld [vmem:[%s195 + $0x10] sm:$0xff]
        %v237 = vld [vmem:[%s195 + $0x18] sm:$0xff]
        %s238 = scalar_lea.vmem %s195, 32 [#allocation2]
        %v239 = vld [vmem:[%s238] sm:$0xff]
        %v240 = vld [vmem:[%s238 + $0x8] sm:$0xff]
        %v241 = vld [vmem:[%s238 + $0x10] sm:$0xff]
        %v242 = vld [vmem:[%s238 + $0x18] sm:$0xff]
        %v247 = vunpack.c.l.b16 %v234
        %v248 = vunpack.c.h.b16 %v234
        %v249 = vunpack.c.l.b16 %v235
        %v250 = vunpack.c.h.b16 %v235
        %v251 = vunpack.c.l.b16 %v236
        %v252 = vunpack.c.h.b16 %v236
        %v253 = vunpack.c.l.b16 %v237
        %v254 = vunpack.c.h.b16 %v237
        %v255 = vpack.c.b16 %v249, %v247
        %v256 = vpack.c.b16 %v250, %v248
        %v257 = vpack.c.b16 %v253, %v251
        %v258 = vpack.c.b16 %v254, %v252
        %v267 = vunpack.c.l.b16 %v239
        %v268 = vunpack.c.h.b16 %v239
        %v269 = vunpack.c.l.b16 %v240
        %v270 = vunpack.c.h.b16 %v240
        %v271 = vunpack.c.l.b16 %v241
        %v272 = vunpack.c.h.b16 %v241
        %v273 = vunpack.c.l.b16 %v242
        %v274 = vunpack.c.h.b16 %v242
        %v275 = vpack.c.b16 %v269, %v267
        %v276 = vpack.c.b16 %v270, %v268
        %v277 = vpack.c.b16 %v273, %v271
        %v278 = vpack.c.b16 %v274, %v272
        %v283 = vld [vmem:[#allocation4] sm:$0xff]
        %v284 = vld [vmem:[#allocation4 + $0x8] sm:$0xff]
        %v285 = vld [vmem:[#allocation4 + $0x10] sm:$0xff]
        %v286 = vld [vmem:[#allocation4 + $0x18] sm:$0xff]
        %v287 = vld [vmem:[#allocation4 + $0x20] sm:$0xff]
        %v288 = vld [vmem:[#allocation4 + $0x28] sm:$0xff]
        %v289 = vld [vmem:[#allocation4 + $0x30] sm:$0xff]
        %v290 = vld [vmem:[#allocation4 + $0x38] sm:$0xff]
        %v291 = vld [vmem:[#allocation4 + $0x40] sm:$0xff]
        %v292 = vld [vmem:[#allocation4 + $0x48] sm:$0xff]
        %v293 = vld [vmem:[#allocation4 + $0x50] sm:$0xff]
        %v294 = vld [vmem:[#allocation4 + $0x58] sm:$0xff]
        %v295 = vld [vmem:[#allocation4 + $0x60] sm:$0xff]
        %v296 = vld [vmem:[#allocation4 + $0x68] sm:$0xff]
        %v297 = vld [vmem:[#allocation4 + $0x70] sm:$0xff]
        %v298 = vld [vmem:[#allocation4 + $0x78] sm:$0xff]
        %v299 = vld [vmem:[#allocation4 + $0x80] sm:$0xff]
        %v300 = vld [vmem:[#allocation4 + $0x88] sm:$0xff]
        %v301 = vld [vmem:[#allocation4 + $0x90] sm:$0xff]
        %v302 = vld [vmem:[#allocation4 + $0x98] sm:$0xff]
        %v303 = vld [vmem:[#allocation4 + $0xa0] sm:$0xff]
        %v304 = vld [vmem:[#allocation4 + $0xa8] sm:$0xff]
        %v305 = vld [vmem:[#allocation4 + $0xb0] sm:$0xff]
        %v306 = vld [vmem:[#allocation4 + $0xb8] sm:$0xff]
        %v307 = vld [vmem:[#allocation4 + $0xc0] sm:$0xff]
        %v308 = vld [vmem:[#allocation4 + $0xc8] sm:$0xff]
        %v309 = vld [vmem:[#allocation4 + $0xd0] sm:$0xff]
        %v310 = vld [vmem:[#allocation4 + $0xd8] sm:$0xff]
        %v311 = vld [vmem:[#allocation4 + $0xe0] sm:$0xff]
        %v312 = vld [vmem:[#allocation4 + $0xe8] sm:$0xff]
        %v313 = vld [vmem:[#allocation4 + $0xf0] sm:$0xff]
        %v314 = vld [vmem:[#allocation4 + $0xf8] sm:$0xff]
        %v347 = vunpack.c.l.b16 %v283
        %v348 = vunpack.c.h.b16 %v283
        %v349 = vunpack.c.l.b16 %v284
        %v350 = vunpack.c.h.b16 %v284
        %v351 = vunpack.c.l.b16 %v285
        %v352 = vunpack.c.h.b16 %v285
        %v353 = vunpack.c.l.b16 %v286
        %v354 = vunpack.c.h.b16 %v286
        %v355 = vunpack.c.l.b16 %v287
        %v356 = vunpack.c.h.b16 %v287
        %v357 = vunpack.c.l.b16 %v288
        %v358 = vunpack.c.h.b16 %v288
        %v359 = vunpack.c.l.b16 %v289
        %v360 = vunpack.c.h.b16 %v289
        %v361 = vunpack.c.l.b16 %v290
        %v362 = vunpack.c.h.b16 %v290
        %v363 = vunpack.c.l.b16 %v291
        %v364 = vunpack.c.h.b16 %v291
        %v365 = vunpack.c.l.b16 %v292
        %v366 = vunpack.c.h.b16 %v292
        %v367 = vunpack.c.l.b16 %v293
        %v368 = vunpack.c.h.b16 %v293
        %v369 = vunpack.c.l.b16 %v294
        %v370 = vunpack.c.h.b16 %v294
        %v371 = vunpack.c.l.b16 %v295
        %v372 = vunpack.c.h.b16 %v295
        %v373 = vunpack.c.l.b16 %v296
        %v374 = vunpack.c.h.b16 %v296
        %v375 = vunpack.c.l.b16 %v297
        %v376 = vunpack.c.h.b16 %v297
        %v377 = vunpack.c.l.b16 %v298
        %v378 = vunpack.c.h.b16 %v298
        %v379 = vunpack.c.l.b16 %v299
        %v380 = vunpack.c.h.b16 %v299
        %v381 = vunpack.c.l.b16 %v300
        %v382 = vunpack.c.h.b16 %v300
        %v383 = vunpack.c.l.b16 %v301
        %v384 = vunpack.c.h.b16 %v301
        %v385 = vunpack.c.l.b16 %v302
        %v386 = vunpack.c.h.b16 %v302
        %v387 = vunpack.c.l.b16 %v303
        %v388 = vunpack.c.h.b16 %v303
        %v389 = vunpack.c.l.b16 %v304
        %v390 = vunpack.c.h.b16 %v304
        %v391 = vunpack.c.l.b16 %v305
        %v392 = vunpack.c.h.b16 %v305
        %v393 = vunpack.c.l.b16 %v306
        %v394 = vunpack.c.h.b16 %v306
        %v395 = vunpack.c.l.b16 %v307
        %v396 = vunpack.c.h.b16 %v307
        %v397 = vunpack.c.l.b16 %v308
        %v398 = vunpack.c.h.b16 %v308
        %v399 = vunpack.c.l.b16 %v309
        %v400 = vunpack.c.h.b16 %v309
        %v401 = vunpack.c.l.b16 %v310
        %v402 = vunpack.c.h.b16 %v310
        %v403 = vunpack.c.l.b16 %v311
        %v404 = vunpack.c.h.b16 %v311
        %v405 = vunpack.c.l.b16 %v312
        %v406 = vunpack.c.h.b16 %v312
        %v407 = vunpack.c.l.b16 %v313
        %v408 = vunpack.c.h.b16 %v313
        %v409 = vunpack.c.l.b16 %v314
        %v410 = vunpack.c.h.b16 %v314
        %v411 = vpack.c.b16 %v349, %v347
        %v412 = vpack.c.b16 %v350, %v348
        %v413 = vpack.c.b16 %v353, %v351
        %v414 = vpack.c.b16 %v354, %v352
        %v415 = vpack.c.b16 %v357, %v355
        %v416 = vpack.c.b16 %v358, %v356
        %v417 = vpack.c.b16 %v361, %v359
        %v418 = vpack.c.b16 %v362, %v360
        %v419 = vpack.c.b16 %v365, %v363
        %v420 = vpack.c.b16 %v366, %v364
        %v421 = vpack.c.b16 %v369, %v367
        %v422 = vpack.c.b16 %v370, %v368
        %v423 = vpack.c.b16 %v373, %v371
        %v424 = vpack.c.b16 %v374, %v372
        %v425 = vpack.c.b16 %v377, %v375
        %v426 = vpack.c.b16 %v378, %v376
        %v427 = vpack.c.b16 %v381, %v379
        %v428 = vpack.c.b16 %v382, %v380
        %v429 = vpack.c.b16 %v385, %v383
        %v430 = vpack.c.b16 %v386, %v384
        %v431 = vpack.c.b16 %v389, %v387
        %v432 = vpack.c.b16 %v390, %v388
        %v433 = vpack.c.b16 %v393, %v391
        %v434 = vpack.c.b16 %v394, %v392
        %v435 = vpack.c.b16 %v397, %v395
        %v436 = vpack.c.b16 %v398, %v396
        %v437 = vpack.c.b16 %v401, %v399
        %v438 = vpack.c.b16 %v402, %v400
        %v439 = vpack.c.b16 %v405, %v403
        %v440 = vpack.c.b16 %v406, %v404
        %v441 = vpack.c.b16 %v409, %v407
        %v442 = vpack.c.b16 %v410, %v408
        %475 = vmatpush.bf16.msra.mxu0 %v425
        %476 = vmatpush.bf16.msra.mxu0 %v423
        %477 = vmatpush.bf16.msra.mxu0 %v421
        %478 = vmatpush.bf16.msra.mxu0 %v419
        %479 = vmatpush.bf16.msra.mxu0 %v417
        %480 = vmatpush.bf16.msra.mxu0 %v415
        %481 = vmatpush.bf16.msra.mxu0 %v413
        %482 = vmatpush.bf16.msra.mxu0 %v411
        %483 = vmatmul.bf16.gmra.mxu0 %v255
        %v484 = vpop.f32.mrf.mxu0
        %v485 = vadd.f32 0.0, %v484
        %v486 = vpop.f32.mrf.mxu0
        %v487 = vadd.f32 0.0, %v486
        %488 = vmatmul.bf16.gmra.mxu0 %v257
        %v489 = vpop.f32.mrf.mxu0
        %v490 = vadd.f32 0.0, %v489
        %v491 = vpop.f32.mrf.mxu0
        %v492 = vadd.f32 0.0, %v491
        %493 = vmatmul.bf16.gmra.mxu0 %v275
        %v494 = vpop.f32.mrf.mxu0
        %v495 = vadd.f32 0.0, %v494
        %v496 = vpop.f32.mrf.mxu0
        %v497 = vadd.f32 0.0, %v496
        %498 = vmatmul.bf16.gmra.mxu0 %v277
        %v499 = vpop.f32.mrf.mxu0
        %v500 = vadd.f32 0.0, %v499
        %v501 = vpop.f32.mrf.mxu0
        %v502 = vadd.f32 0.0, %v501
        %503 = vdwg.mxu0
        %504 = vmatpush.bf16.msra.mxu0 %v441
        %505 = vmatpush.bf16.msra.mxu0 %v439
        %506 = vmatpush.bf16.msra.mxu0 %v437
        %507 = vmatpush.bf16.msra.mxu0 %v435
        %508 = vmatpush.bf16.msra.mxu0 %v433
        %509 = vmatpush.bf16.msra.mxu0 %v431
        %510 = vmatpush.bf16.msra.mxu0 %v429
        %511 = vmatpush.bf16.msra.mxu0 %v427
        %512 = vmatmul.bf16.gmra.mxu0 %v256
        %v513 = vpop.f32.mrf.mxu0
        %v514 = vadd.f32 %v485, %v513
        %v515 = vpop.f32.mrf.mxu0
        %v516 = vadd.f32 %v487, %v515
        %517 = vmatmul.bf16.gmra.mxu0 %v258
        %v518 = vpop.f32.mrf.mxu0
        %v519 = vadd.f32 %v490, %v518
        %v520 = vpop.f32.mrf.mxu0
        %v521 = vadd.f32 %v492, %v520
        %522 = vmatmul.bf16.gmra.mxu0 %v276
        %v523 = vpop.f32.mrf.mxu0
        %v524 = vadd.f32 %v495, %v523
        %v525 = vpop.f32.mrf.mxu0
        %v526 = vadd.f32 %v497, %v525
        %527 = vmatmul.bf16.gmra.mxu0 %v278
        %v528 = vpop.f32.mrf.mxu0
        %v529 = vadd.f32 %v500, %v528
        %v530 = vpop.f32.mrf.mxu0
        %v531 = vadd.f32 %v502, %v530
        %532 = vdwg.mxu0
        %533 = vmatpush.bf16.msra.mxu0 %v426
        %534 = vmatpush.bf16.msra.mxu0 %v424
        %535 = vmatpush.bf16.msra.mxu0 %v422
        %536 = vmatpush.bf16.msra.mxu0 %v420
        %537 = vmatpush.bf16.msra.mxu0 %v418
        %538 = vmatpush.bf16.msra.mxu0 %v416
        %539 = vmatpush.bf16.msra.mxu0 %v414
        %540 = vmatpush.bf16.msra.mxu0 %v412
        %541 = vmatmul.bf16.gmra.mxu0 %v255
        %v542 = vpop.f32.mrf.mxu0
        %v543 = vadd.f32 0.0, %v542
        %v544 = vpop.f32.mrf.mxu0
        %v545 = vadd.f32 0.0, %v544
        %546 = vmatmul.bf16.gmra.mxu0 %v257
        %v547 = vpop.f32.mrf.mxu0
        %v548 = vadd.f32 0.0, %v547
        %v549 = vpop.f32.mrf.mxu0
        %v550 = vadd.f32 0.0, %v549
        %551 = vmatmul.bf16.gmra.mxu0 %v275
        %v552 = vpop.f32.mrf.mxu0
        %v553 = vadd.f32 0.0, %v552
        %v554 = vpop.f32.mrf.mxu0
        %v555 = vadd.f32 0.0, %v554
        %556 = vmatmul.bf16.gmra.mxu0 %v277
        %v557 = vpop.f32.mrf.mxu0
        %v558 = vadd.f32 0.0, %v557
        %v559 = vpop.f32.mrf.mxu0
        %v560 = vadd.f32 0.0, %v559
        %561 = vdwg.mxu0
        %562 = vmatpush.bf16.msra.mxu0 %v442
        %563 = vmatpush.bf16.msra.mxu0 %v440
        %564 = vmatpush.bf16.msra.mxu0 %v438
        %565 = vmatpush.bf16.msra.mxu0 %v436
        %566 = vmatpush.bf16.msra.mxu0 %v434
        %567 = vmatpush.bf16.msra.mxu0 %v432
        %568 = vmatpush.bf16.msra.mxu0 %v430
        %569 = vmatpush.bf16.msra.mxu0 %v428
        %570 = vmatmul.bf16.gmra.mxu0 %v256
        %v571 = vpop.f32.mrf.mxu0
        %v572 = vadd.f32 %v543, %v571
        %v573 = vpop.f32.mrf.mxu0
        %v574 = vadd.f32 %v545, %v573
        %575 = vmatmul.bf16.gmra.mxu0 %v258
        %v576 = vpop.f32.mrf.mxu0
        %v577 = vadd.f32 %v548, %v576
        %v578 = vpop.f32.mrf.mxu0
        %v579 = vadd.f32 %v550, %v578
        %580 = vmatmul.bf16.gmra.mxu0 %v276
        %v581 = vpop.f32.mrf.mxu0
        %v582 = vadd.f32 %v553, %v581
        %v583 = vpop.f32.mrf.mxu0
        %v584 = vadd.f32 %v555, %v583
        %585 = vmatmul.bf16.gmra.mxu0 %v278
        %v586 = vpop.f32.mrf.mxu0
        %v587 = vadd.f32 %v558, %v586
        %v588 = vpop.f32.mrf.mxu0
        %v589 = vadd.f32 %v560, %v588
        %590 = vdwg.mxu0
        %v591 = vmul.f32 %v514, %v514
        %v592 = vmul.f32 %v516, %v516
        %v593 = vmul.f32 %v519, %v519
        %v594 = vmul.f32 %v521, %v521
        %v595 = vmul.f32 %v524, %v524
        %v596 = vmul.f32 %v526, %v526
        %v597 = vmul.f32 %v529, %v529
        %v598 = vmul.f32 %v531, %v531
        %v599 = vmul.f32 %v572, %v572
        %v600 = vmul.f32 %v574, %v574
        %v601 = vmul.f32 %v577, %v577
        %v602 = vmul.f32 %v579, %v579
        %v603 = vmul.f32 %v582, %v582
        %v604 = vmul.f32 %v584, %v584
        %v605 = vmul.f32 %v587, %v587
        %v606 = vmul.f32 %v589, %v589
        %v607 = vadd.f32 %v591, %v599
        %v608 = vadd.f32 %v592, %v600
        %v609 = vadd.f32 %v593, %v601
        %v610 = vadd.f32 %v594, %v602
        %v611 = vadd.f32 %v595, %v603
        %v612 = vadd.f32 %v596, %v604
        %v613 = vadd.f32 %v597, %v605
        %v614 = vadd.f32 %v598, %v606
        %v615 = vpack.c.bf16 %v608, %v607
        %v616 = vpack.c.bf16 %v610, %v609
        %v617 = vpack.c.bf16 %v612, %v611
        %v618 = vpack.c.bf16 %v614, %v613
        %v619 = vld [vmem:[%s2] sm:$0xf]
        %v620 = vld [vmem:[%s2 + $0x4] sm:$0xf]
        %v621 = vld [vmem:[%s2 + $0x8] sm:$0xf]
        %v622 = vld [vmem:[%s2 + $0xc] sm:$0xf]
        %v623 = vld [vmem:[%s2 + $0x10] sm:$0xf]
        %v624 = vld [vmem:[%s2 + $0x14] sm:$0xf]
        %v625 = vld [vmem:[%s2 + $0x18] sm:$0xf]
        %v626 = vld [vmem:[%s2 + $0x1c] sm:$0xf]
        %v627 = vld [vmem:[%s2 + $0x20] sm:$0xf]
        %v628 = vld [vmem:[%s2 + $0x24] sm:$0xf]
        %v629 = vld [vmem:[%s2 + $0x28] sm:$0xf]
        %v630 = vld [vmem:[%s2 + $0x2c] sm:$0xf]
        %v631 = vld [vmem:[%s2 + $0x30] sm:$0xf]
        %v632 = vld [vmem:[%s2 + $0x34] sm:$0xf]
        %v633 = vld [vmem:[%s2 + $0x38] sm:$0xf]
        %v634 = vld [vmem:[%s2 + $0x3c] sm:$0xf]
        %v651 = vunpack.c.l.b16 %v619
        %v652 = vunpack.c.l.b16 %v620
        %v653 = vunpack.c.l.b16 %v621
        %v654 = vunpack.c.l.b16 %v622
        %v655 = vunpack.c.l.b16 %v623
        %v656 = vunpack.c.l.b16 %v624
        %v657 = vunpack.c.l.b16 %v625
        %v658 = vunpack.c.l.b16 %v626
        %v659 = vunpack.c.l.b16 %v627
        %v660 = vunpack.c.l.b16 %v628
        %v661 = vunpack.c.l.b16 %v629
        %v662 = vunpack.c.l.b16 %v630
        %v663 = vunpack.c.l.b16 %v631
        %v664 = vunpack.c.l.b16 %v632
        %v665 = vunpack.c.l.b16 %v633
        %v666 = vunpack.c.l.b16 %v634
        %v667 = vpack.c.b16 %v652, %v651
        %v668 = vpack.c.b16 %v654, %v653
        %v669 = vpack.c.b16 %v656, %v655
        %v670 = vpack.c.b16 %v658, %v657
        %v671 = vpack.c.b16 %v660, %v659
        %v672 = vpack.c.b16 %v662, %v661
        %v673 = vpack.c.b16 %v664, %v663
        %v674 = vpack.c.b16 %v666, %v665
        %683 = vmatpush.bf16.msra.mxu0 %v674
        %684 = vmatpush.bf16.msra.mxu0 %v673
        %685 = vmatpush.bf16.msra.mxu0 %v672
        %686 = vmatpush.bf16.msra.mxu0 %v671
        %687 = vmatpush.bf16.msra.mxu0 %v670
        %688 = vmatpush.bf16.msra.mxu0 %v669
        %689 = vmatpush.bf16.msra.mxu0 %v668
        %690 = vmatpush.bf16.msra.mxu0 %v667
        %691 = vmatmul.bf16.gmra.mxu0 %v615
        %v692 = vpop.f32.mrf.mxu0
        %v693 = vadd.f32 0.0, %v692
        %v694 = vpop.f32.mrf.mxu0
        %v695 = vadd.f32 0.0, %v694
        %696 = vmatmul.bf16.gmra.mxu0 %v616
        %v697 = vpop.f32.mrf.mxu0
        %v698 = vadd.f32 0.0, %v697
        %v699 = vpop.f32.mrf.mxu0
        %v700 = vadd.f32 0.0, %v699
        %701 = vmatmul.bf16.gmra.mxu0 %v617
        %v702 = vpop.f32.mrf.mxu0
        %v703 = vadd.f32 0.0, %v702
        %v704 = vpop.f32.mrf.mxu0
        %v705 = vadd.f32 0.0, %v704
        %706 = vmatmul.bf16.gmra.mxu0 %v618
        %v707 = vpop.f32.mrf.mxu0
        %v708 = vadd.f32 0.0, %v707
        %v709 = vpop.f32.mrf.mxu0
        %v710 = vadd.f32 0.0, %v709
        %711 = vdwg.mxu0
        %v712 = vadd.f32 %v693, 1.0
        %v713 = vadd.f32 %v695, 1.0
        %v714 = vadd.f32 %v698, 1.0
        %v715 = vadd.f32 %v700, 1.0
        %v716 = vlog2.pop %v712
        %v717 = vmul.f32 %v716, 0.6931472
        %v718 = vlog2.pop %v713
        %v719 = vmul.f32 %v718, 0.6931472
        %v720 = vlog2.pop %v714
        %v721 = vmul.f32 %v720, 0.6931472
        %v722 = vlog2.pop %v715
        %v723 = vmul.f32 %v722, 0.6931472
        %v724 = vadd.f32 %v703, 1.0
        %v725 = vadd.f32 %v705, 1.0
        %v726 = vadd.f32 %v708, 1.0
        %v727 = vadd.f32 %v710, 1.0
        %v728 = vlog2.pop %v724
        %v729 = vmul.f32 %v728, 0.6931472
        %v730 = vlog2.pop %v725
        %v731 = vmul.f32 %v730, 0.6931472
        %v732 = vlog2.pop %v726
        %v733 = vmul.f32 %v732, 0.6931472
        %v734 = vlog2.pop %v727
        %v735 = vmul.f32 %v734, 0.6931472
        %v736 = vsub.f32 %v717, %v729
        %v737 = vsub.f32 %v719, %v731
        %v738 = vsub.f32 %v721, %v733
        %v739 = vsub.f32 %v723, %v735
        %v740 = vmul.f32 %v736, %v736
        %v741 = vmul.f32 %v737, %v737
        %v742 = vmul.f32 %v738, %v738
        %v743 = vmul.f32 %v739, %v739
        %vm744 = vcmask 130048
        %v745 = vsel %vm744, %v740, 0.0
        %v746 = vsel %vm744, %v741, 0.0
        %v747 = vadd.f32 %v745, %v746
        %v748 = vsel %vm744, %v742, 0.0
        %v749 = vadd.f32 %v747, %v748
        %v750 = vsel %vm744, %v743, 0.0
        %v751 = vadd.f32 %v749, %v750
        %v752 = vrot.slane %v751, 4
        %v753 = vadd.f32 %v751, %v752
        %v754 = vrot.slane %v753, 2
        %v755 = vadd.f32 %v753, %v754
        %v756 = vrot.slane %v755, 1
        %v757 = vadd.f32 %v755, %v756
        %v758 = vmul.f32 %v693, %v693
        %v759 = vmul.f32 %v695, %v695
        %v760 = vmul.f32 %v698, %v698
        %v761 = vmul.f32 %v700, %v700
        %v762 = vsel %vm744, %v758, 0.0
        %v763 = vsel %vm744, %v759, 0.0
        %v764 = vadd.f32 %v762, %v763
        %v765 = vsel %vm744, %v760, 0.0
        %v766 = vadd.f32 %v764, %v765
        %v767 = vsel %vm744, %v761, 0.0
        %v768 = vadd.f32 %v766, %v767
        %v769 = vrot.slane %v768, 4
        %v770 = vadd.f32 %v768, %v769
        %v771 = vrot.slane %v770, 2
        %v772 = vadd.f32 %v770, %v771
        %v773 = vrot.slane %v772, 1
        %v774 = vadd.f32 %v772, %v773
        %v775 = vmul.f32 %v703, %v703
        %v776 = vmul.f32 %v705, %v705
        %v777 = vmul.f32 %v708, %v708
        %v778 = vmul.f32 %v710, %v710
        %v779 = vsel %vm744, %v775, 0.0
        %v780 = vsel %vm744, %v776, 0.0
        %v781 = vadd.f32 %v779, %v780
        %v782 = vsel %vm744, %v777, 0.0
        %v783 = vadd.f32 %v781, %v782
        %v784 = vsel %vm744, %v778, 0.0
        %v785 = vadd.f32 %v783, %v784
        %v786 = vrot.slane %v785, 4
        %v787 = vadd.f32 %v785, %v786
        %v788 = vrot.slane %v787, 2
        %v789 = vadd.f32 %v787, %v788
        %v790 = vrot.slane %v789, 1
        %v791 = vadd.f32 %v789, %v790
        %vm792 = vcmask 1040384
        %v793 = vsel %vm792, %v757, %v774
        %vm794 = vcmask 1041408
        %v795 = vsel %vm794, %v793, %v791
        %vm796 = vcmask 124928
        %797 = vst.msk [vmem:[%s233] sm:$0x7] %vm796, %v795
        %p798 = scmp.lt.s32.totalorder %s22, 1
        %s799 = scalar_select %p798, %s22, 1
        %p800 = scmp.lt.s32.totalorder %s23, 0
        %s801 = scalar_select %p800, %s23, 0
        %s802 = sadd.s32 %s801, %s799
        %s803 = smul.addr %s802, 4
        %s804 = scalar_lea.vmem %s3, %s803
        // Predicated region
        $region41: #{tpu_custom_call.1} parent=31 // pred_check
          %p805 = pneg %p120
        $region42: #{tpu_custom_call.1} parent=31 // pred_check_branch
          %807 = sbr.rel (%p805) target = $region44
        $region43: #{tpu_custom_call.1} parent=31 // pred_region
          _
        $region44: #{tpu_custom_call.1} parent=31 // pred_fallthru
          _
      $region32: #{tpu_custom_call.1} parent=5 // pred_fallthru
        _
      %p808 = scmp.le.s32.totalorder 2, %s13
      // Predicated region
      $region45: #{tpu_custom_call.1} parent=5 // pred_check
        %p809 = pneg %p808
      $region46: #{tpu_custom_call.1} parent=5 // pred_check_branch
        %811 = sbr.rel (%p809) target = $region48
      $region47: #{tpu_custom_call.1} parent=5 // pred_region
        %s812 = ssub.s32 %s13, 2
        // Predicated region
        $region49: #{tpu_custom_call.1} parent=47 // pred_check
          %p813 = pneg %p126
        $region50: #{tpu_custom_call.1} parent=47 // pred_check_branch
          %815 = sbr.rel (%p813) target = $region52
        $region51: #{tpu_custom_call.1} parent=47 // pred_region
          %p816 = scmp.lt.s32.totalorder %s24, 1
          %s817 = scalar_select %p816, %s24, 1
          %p818 = scmp.lt.s32.totalorder %s25, 0
          %s819 = scalar_select %p818, %s25, 0
          %s820 = sadd.s32 %s819, %s817
          %s821 = smul.addr %s820, 4
          %s822 = scalar_lea.vmem %s3, %s821
        $region52: #{tpu_custom_call.1} parent=47 // pred_fallthru
          _
      $region48: #{tpu_custom_call.1} parent=5 // pred_fallthru
        _
    $region6: #{tpu_custom_call.1} parent=1 // loop_footer
      %s17 = sadd.s32 1, %s13
    $region7: #{tpu_custom_call.1} parent=1 // loop_footer_branch
      %12 = sbr.rel target = $region3
    $region8: #{tpu_custom_call.1} parent=1 // loop_exit
      _
    %823 = vsyncpa [#allocation3], 1
    %s824 = scalar_lea.sflag [#allocation3], 1
    %825 = vsyncpa %s824, 1
    %826 = vsyncpa [#allocation5], 1

// kernel: tpu_custom_call.1
$region0: #{tpu_custom_call.1}
  #allocation0 [shape = 'u32[]', space=smem, size = 0x4, offset = 0x4, fixed_abs, tag = 'smem constant byte address 0x4 - core index']
  #allocation1 [shape = 'u32[72,128]{1,0:T(1,128)}', space=vmem, size = 0x9000, scoped, tag = 'internal scratch']
  %s0 = inlined_call_operand.hbm [shape: bf16[2,2,32,256], index: 0, kind: input, shape index: {}]
  %s1 = inlined_call_operand.hbm [shape: bf16[256,256], index: 1, kind: input, shape index: {}]
  %s2 = inlined_call_operand.vmem [shape: bf16[128,16], index: 2, kind: input, shape index: {}]
  %s3 = inlined_call_operand.vmem [shape: f32[2,1,3,16], index: 3, kind: output, shape index: {}]
  %s4 = sld [smem:[#allocation0]]
  $region53: #{tpu_custom_call.1} parent=0
    _
  %s6 = ssub.s32 1, %s4
  %s7 = scalar_select 0, %s6, %s4
  $region1: #{tpu_custom_call.1} parent=0
    #allocation2 [shape = 'u8[65536]{0}', space=vmem, size = 0x10000, scoped, tag = 'input window, operand 0']
    #allocation3 [shape = 's32[2]{0}', space=sflag, size = 0x8, scoped, tag = 'scoped memory for tpu_custom_call.1']
    #allocation4 [shape = 'u8[131072]{0}', space=vmem, size = 0x20000, scoped, tag = 'input window, operand 1, single buffered']
    #allocation5 [shape = 's32[1]{0}', space=sflag, size = 0x4, scoped, tag = 'scoped memory for tpu_custom_call.1']
    %8 = vsyncpa [#allocation3], 0
    %s9 = scalar_lea.sflag [#allocation3], 1
    %10 = vsyncpa %s9, 0
    %11 = vsyncpa [#allocation5], 0
    loop: start=0, step=1, limit=4
    $region2: #{tpu_custom_call.1} parent=1 // loop_pre_header
      _
    $region3: #{tpu_custom_call.1} parent=1 // loop_header
      %s13 = sphi 0, %s17
      %p14 = scmp.ge.s32.totalorder %s13, 4
      %s20 = sphi 0, %s32
      %s21 = sphi 0, %s28
      %s22 = sphi 0, %s20
      %s23 = sphi 0, %s21
      %s24 = sphi 0, %s22
      %s25 = sphi 0, %s23
      %s37 = sphi 0, %s39
      %s40 = sphi 0, %s37
      %s41 = sphi 0, %s40
      %s57 = sphi 0, %s41
      %s61 = sphi 0, %s61
      %s63 = sphi 0, %s61
      %s64 = sphi 0, %s63
      %s78 = sphi 0, %s64
      %s82 = sphi 0, %s82
      %s84 = sphi 0, %s82
      %s85 = sphi 0, %s84
      %s99 = sphi 0, %s85
      %s107 = sphi 0, %s109
      %s110 = sphi 0, %s107
      %s111 = sphi 0, %s110
      %s127 = sphi 0, %s111
    $region4: #{tpu_custom_call.1} parent=1 // loop_header_branch
      %16 = sbr.rel (%p14) target = $region8
    $region5: #{tpu_custom_call.1} parent=1 // loop_body
      %s18 = ssub.s32 %s13, 1
      %s19 = ssub.s32 %s13, 2
      %s26 = sadd.s32 1, %s21
      %p27 = scmp.ge.s32.totalorder %s26, 1
      %s28 = scalar_select %p27, 0, %s26
      %s29 = sadd.s32 1, %s20
      %s30 = scalar_select %p27, %s29, %s20
      %p31 = scmp.ge.s32.totalorder %s30, 2
      %s32 = scalar_select %p31, 0, %s30
      %s33 = ssub.s32 %s20, %s32
      %s34 = ssub.s32 %s21, %s28
      %s35 = sor.u32 %s33, %s34
      %p36 = scmp.eq.s32.totalorder %s35, 0
      %s38 = sadd.s32 %s37, 1
      %s39 = scalar_select %p36, %s37, %s38
      %p42 = pneg %p36
      %p43 = scmp.eq.s32.totalorder %s13, 1
      %p44 = por %p42, %p43
      %p45 = scmp.ne.s32.totalorder %s37, %s40
      %p46 = scmp.eq.s32.totalorder %s13, 0
      %p47 = por %p45, %p46
      %p48 = scmp.ne.s32.totalorder %s37, %s40
      %p49 = scmp.eq.s32.totalorder %s18, 1
      %p50 = por %p48, %p49
      %p51 = scmp.ne.s32.totalorder %s40, %s41
      %p52 = scmp.eq.s32.totalorder %s18, 0
      %p53 = por %p51, %p52
      %p54 = scmp.ne.s32.totalorder %s40, %s41
      %p55 = scmp.eq.s32.totalorder %s19, 1
      %p56 = por %p54, %p55
      %p58 = scmp.ne.s32.totalorder %s41, %s57
      %p59 = scmp.eq.s32.totalorder %s19, 0
      %p60 = por %p58, %p59
      %s62 = sadd.s32 %s61, 1
      %p65 = scmp.eq.s32.totalorder %s13, 1
      %p66 = scmp.ne.s32.totalorder %s61, %s63
      %p67 = scmp.eq.s32.totalorder %s13, 0
      %p68 = por %p66, %p67
      %p69 = scmp.ne.s32.totalorder %s61, %s63
      %p70 = scmp.eq.s32.totalorder %s18, 1
      %p71 = por %p69, %p70
      %p72 = scmp.ne.s32.totalorder %s63, %s64
      %p73 = scmp.eq.s32.totalorder %s18, 0
      %p74 = por %p72, %p73
      %p75 = scmp.ne.s32.totalorder %s63, %s64
      %p76 = scmp.eq.s32.totalorder %s19, 1
      %p77 = por %p75, %p76
      %p79 = scmp.ne.s32.totalorder %s64, %s78
      %p80 = scmp.eq.s32.totalorder %s19, 0
      %p81 = por %p79, %p80
      %s83 = sadd.s32 %s82, 1
      %p86 = scmp.eq.s32.totalorder %s13, 1
      %p87 = scmp.ne.s32.totalorder %s82, %s84
      %p88 = scmp.eq.s32.totalorder %s13, 0
      %p89 = por %p87, %p88
      %p90 = scmp.ne.s32.totalorder %s82, %s84
      %p91 = scmp.eq.s32.totalorder %s18, 1
      %p92 = por %p90, %p91
      %p93 = scmp.ne.s32.totalorder %s84, %s85
      %p94 = scmp.eq.s32.totalorder %s18, 0
      %p95 = por %p93, %p94
      %p96 = scmp.ne.s32.totalorder %s84, %s85
      %p97 = scmp.eq.s32.totalorder %s19, 1
      %p98 = por %p96, %p97
      %p100 = scmp.ne.s32.totalorder %s85, %s99
      %p101 = scmp.eq.s32.totalorder %s19, 0
      %p102 = por %p100, %p101
      %s103 = ssub.s32 %s20, %s32
      %s104 = ssub.s32 %s21, %s28
      %s105 = sor.u32 %s103, %s104
      %p106 = scmp.eq.s32.totalorder %s105, 0
      %s108 = sadd.s32 %s107, 1
      %s109 = scalar_select %p106, %s107, %s108
      %p112 = pneg %p106
      %p113 = scmp.eq.s32.totalorder %s13, 1
      %p114 = por %p112, %p113
      %p115 = scmp.ne.s32.totalorder %s107, %s110
      %p116 = scmp.eq.s32.totalorder %s13, 0
      %p117 = por %p115, %p116
      %p118 = scmp.ne.s32.totalorder %s107, %s110
      %p119 = scmp.eq.s32.totalorder %s18, 1
      %p120 = por %p118, %p119
      %p121 = scmp.ne.s32.totalorder %s110, %s111
      %p122 = scmp.eq.s32.totalorder %s18, 0
      %p123 = por %p121, %p122
      %p124 = scmp.ne.s32.totalorder %s110, %s111
      %p125 = scmp.eq.s32.totalorder %s19, 1
      %p126 = por %p124, %p125
      %p128 = scmp.ne.s32.totalorder %s111, %s127
      %p129 = scmp.eq.s32.totalorder %s19, 0
      %p130 = por %p128, %p129
      %p131 = scmp.le.s32.totalorder 1, %s13
      %p132 = scmp.lt.s32.totalorder %s13, 3
      %p133 = pnand %p131, %p132
      %p134 = pneg %p133
      // Predicated region
      $region9: #{tpu_custom_call.1} parent=5 // pred_check
        _
      $region10: #{tpu_custom_call.1} parent=5 // pred_check_branch
        %136 = sbr.rel (%p133) target = $region12
      $region11: #{tpu_custom_call.1} parent=5 // pred_region
        %s137 = ssub.s32 %s13, 1
        // Predicated region
        $region13: #{tpu_custom_call.1} parent=11 // pred_check
          %p138 = pneg %p74
        $region14: #{tpu_custom_call.1} parent=11 // pred_check_branch
          %140 = sbr.rel (%p138) target = $region16
        $region15: #{tpu_custom_call.1} parent=11 // pred_region
          %142 = vsyncadd [#allocation5], 0
          %s143 = sshll.u32 %s1, 4
          %s144 = int_to_ptr.hbm [resolvable:$true] %s143
          %s145 = sshll.u32 [#allocation4], 4
          %s146 = int_to_ptr.vmem [resolvable:$true] %s145
          %151 = dma.hbm_to_vmem [thread:$0]  %s144, 4096, %s146, [#allocation5], 128, 128, 8
        $region16: #{tpu_custom_call.1} parent=11 // pred_fallthru
          _
        // Predicated region
        $region17: #{tpu_custom_call.1} parent=11 // pred_check
          %p152 = pneg %p95
        $region18: #{tpu_custom_call.1} parent=11 // pred_check_branch
          %154 = sbr.rel (%p152) target = $region20
        $region19: #{tpu_custom_call.1} parent=11 // pred_region
          _
        $region20: #{tpu_custom_call.1} parent=11 // pred_fallthru
          _
      $region12: #{tpu_custom_call.1} parent=5 // pred_fallthru
        _
      %p155 = scmp.lt.s32.totalorder %s13, 2
      // Predicated region
      $region21: #{tpu_custom_call.1} parent=5 // pred_check
        %p156 = pneg %p155
      $region22: #{tpu_custom_call.1} parent=5 // pred_check_branch
        %158 = sbr.rel (%p156) target = $region24
      $region23: #{tpu_custom_call.1} parent=5 // pred_region
        // Predicated region
        $region25: #{tpu_custom_call.1} parent=23 // pred_check
          %p159 = pneg %p47
        $region26: #{tpu_custom_call.1} parent=23 // pred_check_branch
          %161 = sbr.rel (%p159) target = $region28
        $region27: #{tpu_custom_call.1} parent=23 // pred_region
          %s162 = sand.u32 %s37, 1
          %s163 = scalar_lea.sflag [#allocation3], %s162
          %s164 = sand.u32 %s37, 1
          %s165 = smul.addr %s164, 64
          %s166 = scalar_lea.vmem [#allocation2], %s165
          %s167 = smul.u32 4, %s21
          %169 = vsyncadd %s163, 0
          %s170 = smul.addr %s167, 2
          %s171 = smul.addr %s20, 16
          %s172 = sadd.s32 %s170, %s171
          %s173 = smul.addr %s172, 4
          %s174 = scalar_lea.hbm %s0, %s173
          %s175 = sshll.u32 %s174, 4
          %s176 = int_to_ptr.hbm [resolvable:$true] %s175
          %s177 = sshll.u32 %s166, 4
          %s178 = int_to_ptr.vmem [resolvable:$true] %s177
          %183 = dma.hbm_to_vmem [thread:$0]  %s176, 1024, %s178, %s163, 128, 128, 8
        $region28: #{tpu_custom_call.1} parent=23 // pred_fallthru
          _
      $region24: #{tpu_custom_call.1} parent=5 // pred_fallthru
        _
      %p184 = scmp.le.s32.totalorder 1, %s13
      %p185 = scmp.lt.s32.totalorder %s13, 3
      %p186 = pnand %p184, %p185
      %p187 = pneg %p186
      // Predicated region
      $region29: #{tpu_custom_call.1} parent=5 // pred_check
        _
      $region30: #{tpu_custom_call.1} parent=5 // pred_check_branch
        %189 = sbr.rel (%p186) target = $region32
      $region31: #{tpu_custom_call.1} parent=5 // pred_region
        %s190 = ssub.s32 %s13, 1
        %s191 = sand.u32 %s40, 1
        %s192 = scalar_lea.sflag [#allocation3], %s191
        %s193 = sand.u32 %s40, 1
        %s194 = smul.addr %s193, 64
        %s195 = scalar_lea.vmem [#allocation2], %s194
        // Predicated region
        $region33: #{tpu_custom_call.1} parent=31 // pred_check
          %p196 = pneg %p53
        $region34: #{tpu_custom_call.1} parent=31 // pred_check_branch
          %198 = sbr.rel (%p196) target = $region36
        $region35: #{tpu_custom_call.1} parent=31 // pred_region
          %200 = dma.done %s192, 1024
        $region36: #{tpu_custom_call.1} parent=31 // pred_fallthru
          _
        // Predicated region
        $region37: #{tpu_custom_call.1} parent=31 // pred_check
          %p201 = pneg %p74
        $region38: #{tpu_custom_call.1} parent=31 // pred_check_branch
          %203 = sbr.rel (%p201) target = $region40
        $region39: #{tpu_custom_call.1} parent=31 // pred_region
          %205 = dma.done [#allocation5], 4096
        $region40: #{tpu_custom_call.1} parent=31 // pred_fallthru
          _
        %s206 = sand.u32 %s40, 1
        %s207 = scalar_lea.sflag [#allocation3], %s206
        %s208 = sand.u32 %s40, 1
        %s209 = smul.addr %s208, 64
        %s210 = scalar_lea.vmem [#allocation2], %s209
        %p211 = pneg %p53
        %p212 = pneg %p50
        %p213 = pneg %p74
        %p214 = pneg %p71
        %p215 = pneg %p95
        %p216 = pneg %p92
        %p217 = pneg %p123
        %p218 = pneg %p120
        %p219 = scmp.lt.s32.totalorder %s22, 1
        %s220 = scalar_select %p219, %s22, 1
        %p221 = scmp.lt.s32.totalorder %s23, 0
        %s222 = scalar_select %p221, %s23, 0
        %s223 = sadd.s32 %s222, %s220
        %s224 = smul.addr %s223, 4
        %s225 = scalar_lea.vmem %s3, %s224
        %s226 = smul.u32 4, %s23
        %p227 = scmp.lt.s32.totalorder %s22, 1
        %s228 = scalar_select %p227, %s22, 1
        %p229 = scmp.lt.s32.totalorder %s23, 0
        %s230 = scalar_select %p229, %s23, 0
        %s231 = sadd.s32 %s230, %s228
        %s232 = smul.addr %s231, 4
        %s233 = scalar_lea.vmem %s3, %s232
        %v234 = vld [vmem:[%s195] sm:$0xff]
        %v235 = vld [vmem:[%s195 + $0x8] sm:$0xff]
        %v236 = vld [vmem:[%s195 + $0x10] sm:$0xff]
        %v237 = vld [vmem:[%s195 + $0x18] sm:$0xff]
        %s238 = scalar_lea.vmem %s195, 32 [#allocation2]
        %v239 = vld [vmem:[%s238] sm:$0xff]
        %v240 = vld [vmem:[%s238 + $0x8] sm:$0xff]
        %v241 = vld [vmem:[%s238 + $0x10] sm:$0xff]
        %v242 = vld [vmem:[%s238 + $0x18] sm:$0xff]
        %v247 = vunpack.c.l.b16 %v234
        %v248 = vunpack.c.h.b16 %v234
        %v249 = vunpack.c.l.b16 %v235
        %v250 = vunpack.c.h.b16 %v235
        %v251 = vunpack.c.l.b16 %v236
        %v252 = vunpack.c.h.b16 %v236
        %v253 = vunpack.c.l.b16 %v237
        %v254 = vunpack.c.h.b16 %v237
        %v255 = vpack.c.b16 %v249, %v247
        %v256 = vpack.c.b16 %v250, %v248
        %v257 = vpack.c.b16 %v253, %v251
        %v258 = vpack.c.b16 %v254, %v252
        %v267 = vunpack.c.l.b16 %v239
        %v268 = vunpack.c.h.b16 %v239
        %v269 = vunpack.c.l.b16 %v240
        %v270 = vunpack.c.h.b16 %v240
        %v271 = vunpack.c.l.b16 %v241
        %v272 = vunpack.c.h.b16 %v241
        %v273 = vunpack.c.l.b16 %v242
        %v274 = vunpack.c.h.b16 %v242
        %v275 = vpack.c.b16 %v269, %v267
        %v276 = vpack.c.b16 %v270, %v268
        %v277 = vpack.c.b16 %v273, %v271
        %v278 = vpack.c.b16 %v274, %v272
        %v283 = vld [vmem:[#allocation4] sm:$0xff]
        %v284 = vld [vmem:[#allocation4 + $0x8] sm:$0xff]
        %v285 = vld [vmem:[#allocation4 + $0x10] sm:$0xff]
        %v286 = vld [vmem:[#allocation4 + $0x18] sm:$0xff]
        %v287 = vld [vmem:[#allocation4 + $0x20] sm:$0xff]
        %v288 = vld [vmem:[#allocation4 + $0x28] sm:$0xff]
        %v289 = vld [vmem:[#allocation4 + $0x30] sm:$0xff]
        %v290 = vld [vmem:[#allocation4 + $0x38] sm:$0xff]
        %v291 = vld [vmem:[#allocation4 + $0x40] sm:$0xff]
        %v292 = vld [vmem:[#allocation4 + $0x48] sm:$0xff]
        %v293 = vld [vmem:[#allocation4 + $0x50] sm:$0xff]
        %v294 = vld [vmem:[#allocation4 + $0x58] sm:$0xff]
        %v295 = vld [vmem:[#allocation4 + $0x60] sm:$0xff]
        %v296 = vld [vmem:[#allocation4 + $0x68] sm:$0xff]
        %v297 = vld [vmem:[#allocation4 + $0x70] sm:$0xff]
        %v298 = vld [vmem:[#allocation4 + $0x78] sm:$0xff]
        %v299 = vld [vmem:[#allocation4 + $0x80] sm:$0xff]
        %v300 = vld [vmem:[#allocation4 + $0x88] sm:$0xff]
        %v301 = vld [vmem:[#allocation4 + $0x90] sm:$0xff]
        %v302 = vld [vmem:[#allocation4 + $0x98] sm:$0xff]
        %v303 = vld [vmem:[#allocation4 + $0xa0] sm:$0xff]
        %v304 = vld [vmem:[#allocation4 + $0xa8] sm:$0xff]
        %v305 = vld [vmem:[#allocation4 + $0xb0] sm:$0xff]
        %v306 = vld [vmem:[#allocation4 + $0xb8] sm:$0xff]
        %v307 = vld [vmem:[#allocation4 + $0xc0] sm:$0xff]
        %v308 = vld [vmem:[#allocation4 + $0xc8] sm:$0xff]
        %v309 = vld [vmem:[#allocation4 + $0xd0] sm:$0xff]
        %v310 = vld [vmem:[#allocation4 + $0xd8] sm:$0xff]
        %v311 = vld [vmem:[#allocation4 + $0xe0] sm:$0xff]
        %v312 = vld [vmem:[#allocation4 + $0xe8] sm:$0xff]
        %v313 = vld [vmem:[#allocation4 + $0xf0] sm:$0xff]
        %v314 = vld [vmem:[#allocation4 + $0xf8] sm:$0xff]
        %v347 = vunpack.c.l.b16 %v283
        %v348 = vunpack.c.h.b16 %v283
        %v349 = vunpack.c.l.b16 %v284
        %v350 = vunpack.c.h.b16 %v284
        %v351 = vunpack.c.l.b16 %v285
        %v352 = vunpack.c.h.b16 %v285
        %v353 = vunpack.c.l.b16 %v286
        %v354 = vunpack.c.h.b16 %v286
        %v355 = vunpack.c.l.b16 %v287
        %v356 = vunpack.c.h.b16 %v287
        %v357 = vunpack.c.l.b16 %v288
        %v358 = vunpack.c.h.b16 %v288
        %v359 = vunpack.c.l.b16 %v289
        %v360 = vunpack.c.h.b16 %v289
        %v361 = vunpack.c.l.b16 %v290
        %v362 = vunpack.c.h.b16 %v290
        %v363 = vunpack.c.l.b16 %v291
        %v364 = vunpack.c.h.b16 %v291
        %v365 = vunpack.c.l.b16 %v292
        %v366 = vunpack.c.h.b16 %v292
        %v367 = vunpack.c.l.b16 %v293
        %v368 = vunpack.c.h.b16 %v293
        %v369 = vunpack.c.l.b16 %v294
        %v370 = vunpack.c.h.b16 %v294
        %v371 = vunpack.c.l.b16 %v295
        %v372 = vunpack.c.h.b16 %v295
        %v373 = vunpack.c.l.b16 %v296
        %v374 = vunpack.c.h.b16 %v296
        %v375 = vunpack.c.l.b16 %v297
        %v376 = vunpack.c.h.b16 %v297
        %v377 = vunpack.c.l.b16 %v298
        %v378 = vunpack.c.h.b16 %v298
        %v379 = vunpack.c.l.b16 %v299
        %v380 = vunpack.c.h.b16 %v299
        %v381 = vunpack.c.l.b16 %v300
        %v382 = vunpack.c.h.b16 %v300
        %v383 = vunpack.c.l.b16 %v301
        %v384 = vunpack.c.h.b16 %v301
        %v385 = vunpack.c.l.b16 %v302
        %v386 = vunpack.c.h.b16 %v302
        %v387 = vunpack.c.l.b16 %v303
        %v388 = vunpack.c.h.b16 %v303
        %v389 = vunpack.c.l.b16 %v304
        %v390 = vunpack.c.h.b16 %v304
        %v391 = vunpack.c.l.b16 %v305
        %v392 = vunpack.c.h.b16 %v305
        %v393 = vunpack.c.l.b16 %v306
        %v394 = vunpack.c.h.b16 %v306
        %v395 = vunpack.c.l.b16 %v307
        %v396 = vunpack.c.h.b16 %v307
        %v397 = vunpack.c.l.b16 %v308
        %v398 = vunpack.c.h.b16 %v308
        %v399 = vunpack.c.l.b16 %v309
        %v400 = vunpack.c.h.b16 %v309
        %v401 = vunpack.c.l.b16 %v310
        %v402 = vunpack.c.h.b16 %v310
        %v403 = vunpack.c.l.b16 %v311
        %v404 = vunpack.c.h.b16 %v311
        %v405 = vunpack.c.l.b16 %v312
        %v406 = vunpack.c.h.b16 %v312
        %v407 = vunpack.c.l.b16 %v313
        %v408 = vunpack.c.h.b16 %v313
        %v409 = vunpack.c.l.b16 %v314
        %v410 = vunpack.c.h.b16 %v314
        %v411 = vpack.c.b16 %v349, %v347
        %v412 = vpack.c.b16 %v350, %v348
        %v413 = vpack.c.b16 %v353, %v351
        %v414 = vpack.c.b16 %v354, %v352
        %v415 = vpack.c.b16 %v357, %v355
        %v416 = vpack.c.b16 %v358, %v356
        %v417 = vpack.c.b16 %v361, %v359
        %v418 = vpack.c.b16 %v362, %v360
        %v419 = vpack.c.b16 %v365, %v363
        %v420 = vpack.c.b16 %v366, %v364
        %v421 = vpack.c.b16 %v369, %v367
        %v422 = vpack.c.b16 %v370, %v368
        %v423 = vpack.c.b16 %v373, %v371
        %v424 = vpack.c.b16 %v374, %v372
        %v425 = vpack.c.b16 %v377, %v375
        %v426 = vpack.c.b16 %v378, %v376
        %v427 = vpack.c.b16 %v381, %v379
        %v428 = vpack.c.b16 %v382, %v380
        %v429 = vpack.c.b16 %v385, %v383
        %v430 = vpack.c.b16 %v386, %v384
        %v431 = vpack.c.b16 %v389, %v387
        %v432 = vpack.c.b16 %v390, %v388
        %v433 = vpack.c.b16 %v393, %v391
        %v434 = vpack.c.b16 %v394, %v392
        %v435 = vpack.c.b16 %v397, %v395
        %v436 = vpack.c.b16 %v398, %v396
        %v437 = vpack.c.b16 %v401, %v399
        %v438 = vpack.c.b16 %v402, %v400
        %v439 = vpack.c.b16 %v405, %v403
        %v440 = vpack.c.b16 %v406, %v404
        %v441 = vpack.c.b16 %v409, %v407
        %v442 = vpack.c.b16 %v410, %v408
        %475 = vmatpush.bf16.msra.mxu0 %v425
        %476 = vmatpush.bf16.msra.mxu0 %v423
        %477 = vmatpush.bf16.msra.mxu0 %v421
        %478 = vmatpush.bf16.msra.mxu0 %v419
        %479 = vmatpush.bf16.msra.mxu0 %v417
        %480 = vmatpush.bf16.msra.mxu0 %v415
        %481 = vmatpush.bf16.msra.mxu0 %v413
        %482 = vmatpush.bf16.msra.mxu0 %v411
        %483 = vmatmul.bf16.gmra.mxu0 %v255
        %v484 = vpop.f32.mrf.mxu0
        %v485 = vadd.f32 0.0, %v484
        %v486 = vpop.f32.mrf.mxu0
        %v487 = vadd.f32 0.0, %v486
        %488 = vmatmul.bf16.gmra.mxu0 %v257
        %v489 = vpop.f32.mrf.mxu0
        %v490 = vadd.f32 0.0, %v489
        %v491 = vpop.f32.mrf.mxu0
        %v492 = vadd.f32 0.0, %v491
        %493 = vmatmul.bf16.gmra.mxu0 %v275
        %v494 = vpop.f32.mrf.mxu0
        %v495 = vadd.f32 0.0, %v494
        %v496 = vpop.f32.mrf.mxu0
        %v497 = vadd.f32 0.0, %v496
        %498 = vmatmul.bf16.gmra.mxu0 %v277
        %v499 = vpop.f32.mrf.mxu0
        %v500 = vadd.f32 0.0, %v499
        %v501 = vpop.f32.mrf.mxu0
        %v502 = vadd.f32 0.0, %v501
        %503 = vdwg.mxu0
        %504 = vmatpush.bf16.msra.mxu0 %v441
        %505 = vmatpush.bf16.msra.mxu0 %v439
        %506 = vmatpush.bf16.msra.mxu0 %v437
        %507 = vmatpush.bf16.msra.mxu0 %v435
        %508 = vmatpush.bf16.msra.mxu0 %v433
        %509 = vmatpush.bf16.msra.mxu0 %v431
        %510 = vmatpush.bf16.msra.mxu0 %v429
        %511 = vmatpush.bf16.msra.mxu0 %v427
        %512 = vmatmul.bf16.gmra.mxu0 %v256
        %v513 = vpop.f32.mrf.mxu0
        %v514 = vadd.f32 %v485, %v513
        %v515 = vpop.f32.mrf.mxu0
        %v516 = vadd.f32 %v487, %v515
        %517 = vmatmul.bf16.gmra.mxu0 %v258
        %v518 = vpop.f32.mrf.mxu0
        %v519 = vadd.f32 %v490, %v518
        %v520 = vpop.f32.mrf.mxu0
        %v521 = vadd.f32 %v492, %v520
        %522 = vmatmul.bf16.gmra.mxu0 %v276
        %v523 = vpop.f32.mrf.mxu0
        %v524 = vadd.f32 %v495, %v523
        %v525 = vpop.f32.mrf.mxu0
        %v526 = vadd.f32 %v497, %v525
        %527 = vmatmul.bf16.gmra.mxu0 %v278
        %v528 = vpop.f32.mrf.mxu0
        %v529 = vadd.f32 %v500, %v528
        %v530 = vpop.f32.mrf.mxu0
        %v531 = vadd.f32 %v502, %v530
        %532 = vdwg.mxu0
        %533 = vmatpush.bf16.msra.mxu0 %v426
        %534 = vmatpush.bf16.msra.mxu0 %v424
        %535 = vmatpush.bf16.msra.mxu0 %v422
        %536 = vmatpush.bf16.msra.mxu0 %v420
        %537 = vmatpush.bf16.msra.mxu0 %v418
        %538 = vmatpush.bf16.msra.mxu0 %v416
        %539 = vmatpush.bf16.msra.mxu0 %v414
        %540 = vmatpush.bf16.msra.mxu0 %v412
        %541 = vmatmul.bf16.gmra.mxu0 %v255
        %v542 = vpop.f32.mrf.mxu0
        %v543 = vadd.f32 0.0, %v542
        %v544 = vpop.f32.mrf.mxu0
        %v545 = vadd.f32 0.0, %v544
        %546 = vmatmul.bf16.gmra.mxu0 %v257
        %v547 = vpop.f32.mrf.mxu0
        %v548 = vadd.f32 0.0, %v547
        %v549 = vpop.f32.mrf.mxu0
        %v550 = vadd.f32 0.0, %v549
        %551 = vmatmul.bf16.gmra.mxu0 %v275
        %v552 = vpop.f32.mrf.mxu0
        %v553 = vadd.f32 0.0, %v552
        %v554 = vpop.f32.mrf.mxu0
        %v555 = vadd.f32 0.0, %v554
        %556 = vmatmul.bf16.gmra.mxu0 %v277
        %v557 = vpop.f32.mrf.mxu0
        %v558 = vadd.f32 0.0, %v557
        %v559 = vpop.f32.mrf.mxu0
        %v560 = vadd.f32 0.0, %v559
        %561 = vdwg.mxu0
        %562 = vmatpush.bf16.msra.mxu0 %v442
        %563 = vmatpush.bf16.msra.mxu0 %v440
        %564 = vmatpush.bf16.msra.mxu0 %v438
        %565 = vmatpush.bf16.msra.mxu0 %v436
        %566 = vmatpush.bf16.msra.mxu0 %v434
        %567 = vmatpush.bf16.msra.mxu0 %v432
        %568 = vmatpush.bf16.msra.mxu0 %v430
        %569 = vmatpush.bf16.msra.mxu0 %v428
        %570 = vmatmul.bf16.gmra.mxu0 %v256
        %v571 = vpop.f32.mrf.mxu0
        %v572 = vadd.f32 %v543, %v571
        %v573 = vpop.f32.mrf.mxu0
        %v574 = vadd.f32 %v545, %v573
        %575 = vmatmul.bf16.gmra.mxu0 %v258
        %v576 = vpop.f32.mrf.mxu0
        %v577 = vadd.f32 %v548, %v576
        %v578 = vpop.f32.mrf.mxu0
        %v579 = vadd.f32 %v550, %v578
        %580 = vmatmul.bf16.gmra.mxu0 %v276
        %v581 = vpop.f32.mrf.mxu0
        %v582 = vadd.f32 %v553, %v581
        %v583 = vpop.f32.mrf.mxu0
        %v584 = vadd.f32 %v555, %v583
        %585 = vmatmul.bf16.gmra.mxu0 %v278
        %v586 = vpop.f32.mrf.mxu0
        %v587 = vadd.f32 %v558, %v586
        %v588 = vpop.f32.mrf.mxu0
        %v589 = vadd.f32 %v560, %v588
        %590 = vdwg.mxu0
        %v591 = vmul.f32 %v514, %v514
        %v592 = vmul.f32 %v516, %v516
        %v593 = vmul.f32 %v519, %v519
        %v594 = vmul.f32 %v521, %v521
        %v595 = vmul.f32 %v524, %v524
        %v596 = vmul.f32 %v526, %v526
        %v597 = vmul.f32 %v529, %v529
        %v598 = vmul.f32 %v531, %v531
        %v599 = vmul.f32 %v572, %v572
        %v600 = vmul.f32 %v574, %v574
        %v601 = vmul.f32 %v577, %v577
        %v602 = vmul.f32 %v579, %v579
        %v603 = vmul.f32 %v582, %v582
        %v604 = vmul.f32 %v584, %v584
        %v605 = vmul.f32 %v587, %v587
        %v606 = vmul.f32 %v589, %v589
        %v607 = vadd.f32 %v591, %v599
        %v608 = vadd.f32 %v592, %v600
        %v609 = vadd.f32 %v593, %v601
        %v610 = vadd.f32 %v594, %v602
        %v611 = vadd.f32 %v595, %v603
        %v612 = vadd.f32 %v596, %v604
        %v613 = vadd.f32 %v597, %v605
        %v614 = vadd.f32 %v598, %v606
        %v615 = vpack.c.bf16 %v608, %v607
        %v616 = vpack.c.bf16 %v610, %v609
        %v617 = vpack.c.bf16 %v612, %v611
        %v618 = vpack.c.bf16 %v614, %v613
        %v619 = vld [vmem:[%s2] sm:$0xf]
        %v620 = vld [vmem:[%s2 + $0x4] sm:$0xf]
        %v621 = vld [vmem:[%s2 + $0x8] sm:$0xf]
        %v622 = vld [vmem:[%s2 + $0xc] sm:$0xf]
        %v623 = vld [vmem:[%s2 + $0x10] sm:$0xf]
        %v624 = vld [vmem:[%s2 + $0x14] sm:$0xf]
        %v625 = vld [vmem:[%s2 + $0x18] sm:$0xf]
        %v626 = vld [vmem:[%s2 + $0x1c] sm:$0xf]
        %v627 = vld [vmem:[%s2 + $0x20] sm:$0xf]
        %v628 = vld [vmem:[%s2 + $0x24] sm:$0xf]
        %v629 = vld [vmem:[%s2 + $0x28] sm:$0xf]
        %v630 = vld [vmem:[%s2 + $0x2c] sm:$0xf]
        %v631 = vld [vmem:[%s2 + $0x30] sm:$0xf]
        %v632 = vld [vmem:[%s2 + $0x34] sm:$0xf]
        %v633 = vld [vmem:[%s2 + $0x38] sm:$0xf]
        %v634 = vld [vmem:[%s2 + $0x3c] sm:$0xf]
        %v651 = vunpack.c.l.b16 %v619
        %v652 = vunpack.c.l.b16 %v620
        %v653 = vunpack.c.l.b16 %v621
        %v654 = vunpack.c.l.b16 %v622
        %v655 = vunpack.c.l.b16 %v623
        %v656 = vunpack.c.l.b16 %v624
        %v657 = vunpack.c.l.b16 %v625
        %v658 = vunpack.c.l.b16 %v626
        %v659 = vunpack.c.l.b16 %v627
        %v660 = vunpack.c.l.b16 %v628
        %v661 = vunpack.c.l.b16 %v629
        %v662 = vunpack.c.l.b16 %v630
        %v663 = vunpack.c.l.b16 %v631
        %v664 = vunpack.c.l.b16 %v632
        %v665 = vunpack.c.l.b16 %v633
        %v666 = vunpack.c.l.b16 %v634
        %v667 = vpack.c.b16 %v652, %v651
        %v668 = vpack.c.b16 %v654, %v653
        %v669 = vpack.c.b16 %v656, %v655
        %v670 = vpack.c.b16 %v658, %v657
        %v671 = vpack.c.b16 %v660, %v659
        %v672 = vpack.c.b16 %v662, %v661
        %v673 = vpack.c.b16 %v664, %v663
        %v674 = vpack.c.b16 %v666, %v665
        %683 = vmatpush.bf16.msra.mxu0 %v674
        %684 = vmatpush.bf16.msra.mxu0 %v673
        %685 = vmatpush.bf16.msra.mxu0 %v672
        %686 = vmatpush.bf16.msra.mxu0 %v671
        %687 = vmatpush.bf16.msra.mxu0 %v670
        %688 = vmatpush.bf16.msra.mxu0 %v669
        %689 = vmatpush.bf16.msra.mxu0 %v668
        %690 = vmatpush.bf16.msra.mxu0 %v667
        %691 = vmatmul.bf16.gmra.mxu0 %v615
        %v692 = vpop.f32.mrf.mxu0
        %v693 = vadd.f32 0.0, %v692
        %v694 = vpop.f32.mrf.mxu0
        %v695 = vadd.f32 0.0, %v694
        %696 = vmatmul.bf16.gmra.mxu0 %v616
        %v697 = vpop.f32.mrf.mxu0
        %v698 = vadd.f32 0.0, %v697
        %v699 = vpop.f32.mrf.mxu0
        %v700 = vadd.f32 0.0, %v699
        %701 = vmatmul.bf16.gmra.mxu0 %v617
        %v702 = vpop.f32.mrf.mxu0
        %v703 = vadd.f32 0.0, %v702
        %v704 = vpop.f32.mrf.mxu0
        %v705 = vadd.f32 0.0, %v704
        %706 = vmatmul.bf16.gmra.mxu0 %v618
        %v707 = vpop.f32.mrf.mxu0
        %v708 = vadd.f32 0.0, %v707
        %v709 = vpop.f32.mrf.mxu0
        %v710 = vadd.f32 0.0, %v709
        %711 = vdwg.mxu0
        %v712 = vadd.f32 %v693, 1.0
        %v713 = vadd.f32 %v695, 1.0
        %v714 = vadd.f32 %v698, 1.0
        %v715 = vadd.f32 %v700, 1.0
        %v716 = vlog2.pop %v712
        %v717 = vmul.f32 %v716, 0.6931472
        %v718 = vlog2.pop %v713
        %v719 = vmul.f32 %v718, 0.6931472
        %v720 = vlog2.pop %v714
        %v721 = vmul.f32 %v720, 0.6931472
        %v722 = vlog2.pop %v715
        %v723 = vmul.f32 %v722, 0.6931472
        %v724 = vadd.f32 %v703, 1.0
        %v725 = vadd.f32 %v705, 1.0
        %v726 = vadd.f32 %v708, 1.0
        %v727 = vadd.f32 %v710, 1.0
        %v728 = vlog2.pop %v724
        %v729 = vmul.f32 %v728, 0.6931472
        %v730 = vlog2.pop %v725
        %v731 = vmul.f32 %v730, 0.6931472
        %v732 = vlog2.pop %v726
        %v733 = vmul.f32 %v732, 0.6931472
        %v734 = vlog2.pop %v727
        %v735 = vmul.f32 %v734, 0.6931472
        %v736 = vsub.f32 %v717, %v729
        %v737 = vsub.f32 %v719, %v731
        %v738 = vsub.f32 %v721, %v733
        %v739 = vsub.f32 %v723, %v735
        %v740 = vmul.f32 %v736, %v736
        %v741 = vmul.f32 %v737, %v737
        %v742 = vmul.f32 %v738, %v738
        %v743 = vmul.f32 %v739, %v739
        %vm744 = vcmask 130048
        %v745 = vsel %vm744, %v740, 0.0
        %v746 = vsel %vm744, %v741, 0.0
        %v747 = vadd.f32 %v745, %v746
        %v748 = vsel %vm744, %v742, 0.0
        %v749 = vadd.f32 %v747, %v748
        %v750 = vsel %vm744, %v743, 0.0
        %v751 = vadd.f32 %v749, %v750
        %v752 = vrot.slane %v751, 4
        %v753 = vadd.f32 %v751, %v752
        %v754 = vrot.slane %v753, 2
        %v755 = vadd.f32 %v753, %v754
        %v756 = vrot.slane %v755, 1
        %v757 = vadd.f32 %v755, %v756
        %v758 = vmul.f32 %v693, %v693
        %v759 = vmul.f32 %v695, %v695
        %v760 = vmul.f32 %v698, %v698
        %v761 = vmul.f32 %v700, %v700
        %v762 = vsel %vm744, %v758, 0.0
        %v763 = vsel %vm744, %v759, 0.0
        %v764 = vadd.f32 %v762, %v763
        %v765 = vsel %vm744, %v760, 0.0
        %v766 = vadd.f32 %v764, %v765
        %v767 = vsel %vm744, %v761, 0.0
        %v768 = vadd.f32 %v766, %v767
        %v769 = vrot.slane %v768, 4
        %v770 = vadd.f32 %v768, %v769
        %v771 = vrot.slane %v770, 2
        %v772 = vadd.f32 %v770, %v771
        %v773 = vrot.slane %v772, 1
        %v774 = vadd.f32 %v772, %v773
        %v775 = vmul.f32 %v703, %v703
        %v776 = vmul.f32 %v705, %v705
        %v777 = vmul.f32 %v708, %v708
        %v778 = vmul.f32 %v710, %v710
        %v779 = vsel %vm744, %v775, 0.0
        %v780 = vsel %vm744, %v776, 0.0
        %v781 = vadd.f32 %v779, %v780
        %v782 = vsel %vm744, %v777, 0.0
        %v783 = vadd.f32 %v781, %v782
        %v784 = vsel %vm744, %v778, 0.0
        %v785 = vadd.f32 %v783, %v784
        %v786 = vrot.slane %v785, 4
        %v787 = vadd.f32 %v785, %v786
        %v788 = vrot.slane %v787, 2
        %v789 = vadd.f32 %v787, %v788
        %v790 = vrot.slane %v789, 1
        %v791 = vadd.f32 %v789, %v790
        %vm792 = vcmask 1040384
        %v793 = vsel %vm792, %v757, %v774
        %vm794 = vcmask 1041408
        %v795 = vsel %vm794, %v793, %v791
        %vm796 = vcmask 124928
        %797 = vst.msk [vmem:[%s233] sm:$0x7] %vm796, %v795
        %p798 = scmp.lt.s32.totalorder %s22, 1
        %s799 = scalar_select %p798, %s22, 1
        %p800 = scmp.lt.s32.totalorder %s23, 0
        %s801 = scalar_select %p800, %s23, 0
        %s802 = sadd.s32 %s801, %s799
        %s803 = smul.addr %s802, 4
        %s804 = scalar_lea.vmem %s3, %s803
        // Predicated region
        $region41: #{tpu_custom_call.1} parent=31 // pred_check
          %p805 = pneg %p120
        $region42: #{tpu_custom_call.1} parent=31 // pred_check_branch
          %807 = sbr.rel (%p805) target = $region44
        $region43: #{tpu_custom_call.1} parent=31 // pred_region
          _
        $region44: #{tpu_custom_call.1} parent=31 // pred_fallthru
          _
      $region32: #{tpu_custom_call.1} parent=5 // pred_fallthru
        _
      %p808 = scmp.le.s32.totalorder 2, %s13
      // Predicated region
      $region45: #{tpu_custom_call.1} parent=5 // pred_check
        %p809 = pneg %p808
      $region46: #{tpu_custom_call.1} parent=5 // pred_check_branch
        %811 = sbr.rel (%p809) target = $region48
      $region47: #{tpu_custom_call.1} parent=5 // pred_region
        %s812 = ssub.s32 %s13, 2
        // Predicated region
        $region49: #{tpu_custom_call.1} parent=47 // pred_check
          %p813 = pneg %p126
        $region50: #{tpu_custom_call.1} parent=47 // pred_check_branch
          %815 = sbr.rel (%p813) target = $region52
        $region51: #{tpu_custom_call.1} parent=47 // pred_region
          %p816 = scmp.lt.s32.totalorder %s24, 1
          %s817 = scalar_select %p816, %s24, 1
          %p818 = scmp.lt.s32.totalorder %s25, 0
          %s819 = scalar_select %p818, %s25, 0
          %s820 = sadd.s32 %s819, %s817
          %s821 = smul.addr %s820, 4
          %s822 = scalar_lea.vmem %s3, %s821
        $region52: #{tpu_custom_call.1} parent=47 // pred_fallthru
          _
      $region48: #{tpu_custom_call.1} parent=5 // pred_fallthru
        _
    $region6: #{tpu_custom_call.1} parent=1 // loop_footer
      %s17 = sadd.s32 1, %s13
    $region7: #{tpu_custom_call.1} parent=1 // loop_footer_branch
      %12 = sbr.rel target = $region3
    $region8: #{tpu_custom_call.1} parent=1 // loop_exit
      _
    %823 = vsyncpa [#allocation3], 1
    %s824 = scalar_lea.sflag [#allocation3], 1
    %825 = vsyncpa %s824, 1
    %826 = vsyncpa [#allocation5], 1

</llo_original>
